<compile_context>
chip_gen: v7x
topology: tpu7x:2x2x1
jax: 0.10.0
libtpu: 0.0.40
codegen_flags: <defaults>
</compile_context>

<pallas_src>
import functools

import numpy as np
import jax
import jax.numpy as jnp
from jax.experimental import pallas as pl
from jax.experimental.pallas import tpu as pltpu


def _ru(x, m):
    return ((x + m - 1) // m) * m


# ---------------------------------------------------------------------------
# Kernel
# ---------------------------------------------------------------------------
def _agent_kernel(
    obs_ref,      # [B, IN_pad]      per-timestep block
    h0_ref,       # [B, H_pad]       grid-constant
    w_ref,        # [R, WCOLS]       fused weight slab, grid-constant
    b_ref,        # [8, WCOLS]       fused bias slab, grid-constant
    out_ref,      # [B, OUTW]        per-timestep packed output
    h_scr,        # VMEM scratch [B, H_pad]  hidden-state carry across t
    *,
    IN_pad, H_pad, A_pad, O_pad, T_pad, rows,
):
    f32 = jnp.float32
    t = pl.program_id(0)

    @pl.when(t == 0)
    def _():
        h_scr[...] = h0_ref[...]

    r_fc1, r_wi, r_wh, r_h1, r_we2, r_h2 = rows

    obs = obs_ref[...]
    h_in = h_scr[...]

    # fc1 + ReLU (padded lanes remain exactly 0)
    x = jnp.maximum(
        jnp.dot(obs, w_ref[r_fc1:r_fc1 + IN_pad, 0:H_pad],
                preferred_element_type=f32) + b_ref[0:1, 0:H_pad],
        0.0)

    # GRUCell (PyTorch semantics); gates r, z, n each in their own 128-lane slot.
    gw = 3 * H_pad
    gi = jnp.dot(x, w_ref[r_wi:r_wi + H_pad, 0:gw],
                 preferred_element_type=f32) + b_ref[1:2, 0:gw]
    gh = jnp.dot(h_in, w_ref[r_wh:r_wh + H_pad, 0:gw],
                 preferred_element_type=f32) + b_ref[2:3, 0:gw]

    r_g = jax.nn.sigmoid(gi[:, 0:H_pad] + gh[:, 0:H_pad])
    z_g = jax.nn.sigmoid(gi[:, H_pad:2 * H_pad] + gh[:, H_pad:2 * H_pad])
    n_g = jnp.tanh(gi[:, 2 * H_pad:3 * H_pad] + r_g * gh[:, 2 * H_pad:3 * H_pad])
    h = (1.0 - z_g) * n_g + z_g * h_in
    h_scr[...] = h

    # head1 = [ fc2 | world.hidden_embd.L1 ] on h  (128-aligned slots)
    w1 = A_pad + H_pad
    h1 = jnp.dot(h, w_ref[r_h1:r_h1 + H_pad, 0:w1],
                 preferred_element_type=f32) + b_ref[3:4, 0:w1]
    q = h1[:, 0:A_pad]
    e1 = jnp.maximum(h1[:, A_pad:w1], 0.0)

    # world.hidden_embd.L2 + outer ReLU
    h_emb = jnp.maximum(
        jnp.dot(e1, w_ref[r_we2:r_we2 + H_pad, 0:H_pad],
                preferred_element_type=f32) + b_ref[4:5, 0:H_pad],
        0.0)

    # head2 = [ r_out | o_out | terminate_out ] on h_emb
    w2 = A_pad + O_pad + T_pad
    h2 = jnp.dot(h_emb, w_ref[r_h2:r_h2 + H_pad, 0:w2],
                 preferred_element_type=f32) + b_ref[5:6, 0:w2]
    r_out = h2[:, 0:A_pad]
    o_next = h2[:, A_pad:A_pad + O_pad]
    term = h2[:, A_pad + O_pad:w2]

    # Lane-dense, 128-aligned direct stores (no concat, no zero fill, no shuffle).
    c = 0
    out_ref[:, c:c + A_pad] = q + r_out          # q += r  (module semantics)
    c += A_pad
    out_ref[:, c:c + H_pad] = h
    c += H_pad
    out_ref[:, c:c + A_pad] = r_out
    c += A_pad
    out_ref[:, c:c + O_pad] = o_next
    c += O_pad
    out_ref[:, c:c + T_pad] = term


# ---------------------------------------------------------------------------
# Host-side parameter packing (done once)
# ---------------------------------------------------------------------------
def build_slabs(p, IN, H, A, O):
    """Pack all weights into one [R, WCOLS] slab and all biases into one [8, WCOLS] slab.

    Every logical segment is placed at a 128-aligned column slot and an 8/128-aligned
    row offset; unused entries are zero so padded lanes stay exactly 0 in the kernel.
    """
    IN_pad = _ru(IN, 128)
    H_pad = _ru(H, 128)
    A_pad = _ru(A, 128)
    O_pad = _ru(O, 128)
    T_pad = 128
    WCOLS = max(H_pad, 3 * H_pad, A_pad + H_pad, A_pad + O_pad + T_pad)

    def blk(nrows):
        return np.zeros((nrows, WCOLS), np.float32)

    fc1 = blk(IN_pad)
    fc1[:IN, :H] = np.asarray(p["fc1_w"])

    wi = blk(H_pad)
    wi[:H, 0:H] = np.asarray(p["w_ir"])
    wi[:H, H_pad:H_pad + H] = np.asarray(p["w_iz"])
    wi[:H, 2 * H_pad:2 * H_pad + H] = np.asarray(p["w_in"])

    wh = blk(H_pad)
    wh[:H, 0:H] = np.asarray(p["w_hr"])
    wh[:H, H_pad:H_pad + H] = np.asarray(p["w_hz"])
    wh[:H, 2 * H_pad:2 * H_pad + H] = np.asarray(p["w_hn"])

    h1 = blk(H_pad)
    h1[:H, 0:A] = np.asarray(p["fc2_w"])
    h1[:H, A_pad:A_pad + H] = np.asarray(p["we1_w"])

    we2 = blk(H_pad)
    we2[:H, 0:H] = np.asarray(p["we2_w"])

    h2 = blk(H_pad)
    h2[:H, 0:A] = np.asarray(p["rout_w"])
    h2[:H, A_pad:A_pad + O] = np.asarray(p["oout_w"])
    h2[:H, A_pad + O_pad:A_pad + O_pad + 2] = np.asarray(p["term_w"])

    w_slab = np.concatenate([fc1, wi, wh, h1, we2, h2], axis=0)
    rows = (0, IN_pad, IN_pad + H_pad, IN_pad + 2 * H_pad,
            IN_pad + 3 * H_pad, IN_pad + 4 * H_pad)

    b_slab = np.zeros((8, WCOLS), np.float32)
    b_slab[0, 0:H] = np.asarray(p["fc1_b"])[0]
    b_slab[1, 0:H] = np.asarray(p["b_ir"])[0]
    b_slab[1, H_pad:H_pad + H] = np.asarray(p["b_iz"])[0]
    b_slab[1, 2 * H_pad:2 * H_pad + H] = np.asarray(p["b_in"])[0]
    b_slab[2, 0:H] = np.asarray(p["b_hr"])[0]
    b_slab[2, H_pad:H_pad + H] = np.asarray(p["b_hz"])[0]
    b_slab[2, 2 * H_pad:2 * H_pad + H] = np.asarray(p["b_hn"])[0]
    b_slab[3, 0:A] = np.asarray(p["fc2_b"])[0]
    b_slab[3, A_pad:A_pad + H] = np.asarray(p["we1_b"])[0]
    b_slab[4, 0:H] = np.asarray(p["we2_b"])[0]
    b_slab[5, 0:A] = np.asarray(p["rout_b"])[0]
    b_slab[5, A_pad:A_pad + O] = np.asarray(p["oout_b"])[0]
    b_slab[5, A_pad + O_pad:A_pad + O_pad + 2] = np.asarray(p["term_b"])[0]

    dims = dict(IN=IN, H=H, A=A, O=O, IN_pad=IN_pad, H_pad=H_pad, A_pad=A_pad,
                O_pad=O_pad, T_pad=T_pad, WCOLS=WCOLS, rows=rows)
    return jnp.asarray(w_slab), jnp.asarray(b_slab), dims


# ---------------------------------------------------------------------------
# Wrappers
# ---------------------------------------------------------------------------
def agent_forward_sequence(obs_seq, hidden_state, w_slab, b_slab, dims):
    """Run T GRU timesteps inside one pallas_call.

    obs_seq: [T, B, IN]; hidden_state: [..., H] (reshaped to [B, H]).
    Returns (q, h, r, o_next, terminated), each with leading [T, B, ...].
    """
    d = dims
    T, B, IN = obs_seq.shape
    H = d["H"]
    h0 = hidden_state.reshape(-1, H).astype(jnp.float32)

    obs_p = jnp.zeros((T, B, d["IN_pad"]), jnp.float32).at[:, :, :IN].set(
        obs_seq.astype(jnp.float32))
    h0_p = jnp.zeros((B, d["H_pad"]), jnp.float32).at[:, :H].set(h0)

    OUTW = 2 * d["A_pad"] + d["H_pad"] + d["O_pad"] + d["T_pad"]
    R = w_slab.shape[0]

    kernel = functools.partial(
        _agent_kernel,
        IN_pad=d["IN_pad"], H_pad=d["H_pad"], A_pad=d["A_pad"],
        O_pad=d["O_pad"], T_pad=d["T_pad"], rows=d["rows"])

    packed = pl.pallas_call(
        kernel,
        out_shape=jax.ShapeDtypeStruct((T, B, OUTW), jnp.float32),
        grid_spec=pltpu.PrefetchScalarGridSpec(
            num_scalar_prefetch=0,
            grid=(T,),
            in_specs=[
                pl.BlockSpec((None, B, d["IN_pad"]), lambda t: (t, 0, 0)),
                pl.BlockSpec((B, d["H_pad"]), lambda t: (0, 0)),   # constant -> resident
                pl.BlockSpec((R, d["WCOLS"]), lambda t: (0, 0)),   # constant -> resident
                pl.BlockSpec((8, d["WCOLS"]), lambda t: (0, 0)),   # constant -> resident
            ],
            out_specs=pl.BlockSpec((None, B, OUTW), lambda t: (t, 0, 0)),
            scratch_shapes=[pltpu.VMEM((B, d["H_pad"]), jnp.float32)],
        ),
        compiler_params=pltpu.CompilerParams(
            dimension_semantics=("arbitrary",)),
    )(obs_p, h0_p, w_slab, b_slab)

    A, O = d["A"], d["O"]
    A_pad, H_pad, O_pad = d["A_pad"], d["H_pad"], d["O_pad"]
    c_q = 0
    c_h = A_pad
    c_r = A_pad + H_pad
    c_o = A_pad + H_pad + A_pad
    c_t = A_pad + H_pad + A_pad + O_pad
    q = packed[:, :, c_q:c_q + A]
    h = packed[:, :, c_h:c_h + H]
    r = packed[:, :, c_r:c_r + A]
    o_next = packed[:, :, c_o:c_o + O]
    term = packed[:, :, c_t:c_t + 2]
    return q, h, r, o_next, term


def agent_forward(obs, hidden_state, w_slab, b_slab, dims):
    """Single step, matching Agent.forward(obs, hidden_state) -> (q, returns)."""
    q, h, r, o_next, term = agent_forward_sequence(
        obs[None], hidden_state, w_slab, b_slab, dims)
    returns = {
        "hidden_state": h[0],
        "r": r[0],
        "o_next": o_next[0],
        "terminated": term[0],
    }
    return q[0], returns


# ---------------------------------------------------------------------------
# Parameter init (PyTorch-style uniform; weights stored [in, out])
# ---------------------------------------------------------------------------
def init_params(key, input_shape, rnn_hidden_dim, n_actions, obs_shape):
    def linear(key, fan_in, fan_out):
        k1, k2 = jax.random.split(key)
        bound = 1.0 / jnp.sqrt(fan_in)
        w = jax.random.uniform(k1, (fan_in, fan_out), jnp.float32, -bound, bound)
        b = jax.random.uniform(k2, (1, fan_out), jnp.float32, -bound, bound)
        return w, b

    keys = jax.random.split(key, 16)
    H, A, O = rnn_hidden_dim, n_actions, obs_shape
    p = {}
    p["fc1_w"], p["fc1_b"] = linear(keys[0], input_shape, H)
    p["w_ir"], p["b_ir"] = linear(keys[1], H, H)
    p["w_iz"], p["b_iz"] = linear(keys[2], H, H)
    p["w_in"], p["b_in"] = linear(keys[3], H, H)
    p["w_hr"], p["b_hr"] = linear(keys[4], H, H)
    p["w_hz"], p["b_hz"] = linear(keys[5], H, H)
    p["w_hn"], p["b_hn"] = linear(keys[6], H, H)
    p["fc2_w"], p["fc2_b"] = linear(keys[7], H, A)
    p["we1_w"], p["we1_b"] = linear(keys[8], H, H)
    p["we2_w"], p["we2_b"] = linear(keys[9], H, H)
    p["rout_w"], p["rout_b"] = linear(keys[10], H, A)
    p["oout_w"], p["oout_b"] = linear(keys[11], H, O)
    p["term_w"], p["term_b"] = linear(keys[12], H, 2)
    return p


# Pure-JAX single-step reference (exact module semantics) for a sanity check.
def _ref_step(obs, h_in, p):
    hp = jax.lax.Precision.HIGHEST

    def lin(x, w, b):
        return jnp.dot(x, w, precision=hp) + b

    x = jax.nn.relu(lin(obs, p["fc1_w"], p["fc1_b"]))
    r = jax.nn.sigmoid(lin(x, p["w_ir"], p["b_ir"]) + lin(h_in, p["w_hr"], p["b_hr"]))
    z = jax.nn.sigmoid(lin(x, p["w_iz"], p["b_iz"]) + lin(h_in, p["w_hz"], p["b_hz"]))
    n = jnp.tanh(lin(x, p["w_in"], p["b_in"]) + r * lin(h_in, p["w_hn"], p["b_hn"]))
    h = (1.0 - z) * n + z * h_in
    q = lin(h, p["fc2_w"], p["fc2_b"])
    e1 = jax.nn.relu(lin(h, p["we1_w"], p["we1_b"]))
    h_emb = jax.nn.relu(lin(e1, p["we2_w"], p["we2_b"]))
    rew = lin(h_emb, p["rout_w"], p["rout_b"])
    o_next = lin(h_emb, p["oout_w"], p["oout_b"])
    term = lin(h_emb, p["term_w"], p["term_b"])
    return q + rew, h, rew, o_next, term


if __name__ == "__main__":
    batch = 8              # fills all f32 vreg sublanes
    input_shape = 16       # obs feature dim fed to fc1
    rnn_hidden_dim = 32
    n_actions = 8
    obs_shape = 16         # args.obs_shape (o_next head)
    T = 4                  # rollout length handled inside ONE pallas_call

    key = jax.random.PRNGKey(0)
    k_obs, k_hid, k_par = jax.random.split(key, 3)

    obs_seq = jax.random.normal(k_obs, (T, batch, input_shape), jnp.float32)
    hidden0 = jax.random.normal(k_hid, (batch, rnn_hidden_dim), jnp.float32)
    params = init_params(k_par, input_shape, rnn_hidden_dim, n_actions, obs_shape)
    w_slab, b_slab, dims = build_slabs(
        params, input_shape, rnn_hidden_dim, n_actions, obs_shape)

    # --- single step: exactly Agent.forward(obs, hidden_state) ---
    q, returns = agent_forward(obs_seq[0], hidden0, w_slab, b_slab, dims)
    jax.block_until_ready((q, returns))
    assert q.shape == (batch, n_actions)
    assert returns["hidden_state"].shape == (batch, rnn_hidden_dim)
    assert returns["r"].shape == (batch, n_actions)
    assert returns["o_next"].shape == (batch, obs_shape)
    assert returns["terminated"].shape == (batch, 2)

    # --- T-step rollout in one kernel call (weights DMA'd once, h carried in VMEM) ---
    q_seq, h_seq, r_seq, o_seq, t_seq = agent_forward_sequence(
        obs_seq, hidden0, w_slab, b_slab, dims)
    jax.block_until_ready(q_seq)

    # Sanity check against a pure-JAX reference (loose tol: MXU f32 matmul path).
    h_ref = hidden0
    for t in range(T):
        q_r, h_ref, r_r, o_r, tm_r = _ref_step(obs_seq[t], h_ref, params)
        np.testing.assert_allclose(np.asarray(q_seq[t]), np.asarray(q_r), rtol=3e-2, atol=3e-2)
        np.testing.assert_allclose(np.asarray(h_seq[t]), np.asarray(h_ref), rtol=3e-2, atol=3e-2)
        np.testing.assert_allclose(np.asarray(r_seq[t]), np.asarray(r_r), rtol=3e-2, atol=3e-2)
        np.testing.assert_allclose(np.asarray(o_seq[t]), np.asarray(o_r), rtol=3e-2, atol=3e-2)
        np.testing.assert_allclose(np.asarray(t_seq[t]), np.asarray(tm_r), rtol=3e-2, atol=3e-2)

    print("KERNEL_OK")
</pallas_src>

<mosaic_0001>
module attributes {stable_mosaic.version = 11 : i64} {
  func.func @_agent_kernel(%arg0: i32, %arg1: memref<1x8x128xf32, #tpu.memory_space<vmem>>, %arg2: memref<8x128xf32, #tpu.memory_space<vmem>>, %arg3: memref<768x384xf32, #tpu.memory_space<vmem>>, %arg4: memref<8x384xf32, #tpu.memory_space<vmem>>, %arg5: memref<1x8x640xf32, #tpu.memory_space<vmem>>, %arg6: memref<8x128xf32, #tpu.memory_space<vmem>>) attributes {dimension_semantics = [#tpu.dimension_semantics<arbitrary>], iteration_bounds = array<i64: 1>, scalar_prefetch = 0 : i64, scratch_operands = 1 : i64, tpu.core_type = #tpu.core_type<tc>, window_params = [{transform_indices = @transform_0, window_bounds = array<i64: 1, 8, 128>}, {pipeline_mode = #tpu.pipeline_mode<synchronous>, transform_indices = @transform_1, window_bounds = array<i64: 8, 128>}, {pipeline_mode = #tpu.pipeline_mode<synchronous>, transform_indices = @transform_2, window_bounds = array<i64: 768, 384>}, {pipeline_mode = #tpu.pipeline_mode<synchronous>, transform_indices = @transform_3, window_bounds = array<i64: 8, 384>}, {transform_indices = @transform_4, window_bounds = array<i64: 1, 8, 640>}]} {
    %c0_i32 = arith.constant 0 : i32
    %0 = arith.cmpi eq, %arg0, %c0_i32 : i32
    %1 = arith.extui %0 : i1 to i32
    %c0_i32_0 = arith.constant 0 : i32
    %2 = arith.cmpi ne, %1, %c0_i32_0 : i32
    scf.if %2 {
      %c0_47 = arith.constant 0 : index
      %c0_48 = arith.constant 0 : index
      %90 = vector.load %arg2[%c0_47, %c0_48] : memref<8x128xf32, #tpu.memory_space<vmem>>, vector<8x128xf32>
      %c0_49 = arith.constant 0 : index
      %c0_50 = arith.constant 0 : index
      %91 = vector.load %arg6[%c0_49, %c0_50] : memref<8x128xf32, #tpu.memory_space<vmem>>, vector<8x128xf32>
      tpu.vector_store %arg6[%c0_49, %c0_50], %90 {strides = array<i32>} : memref<8x128xf32, #tpu.memory_space<vmem>>, vector<8x128xf32>,
    } else {
    }
    %c0 = arith.constant 0 : index
    %c0_1 = arith.constant 0 : index
    %c0_2 = arith.constant 0 : index
    %3 = vector.load %arg1[%c0, %c0_1, %c0_2] : memref<1x8x128xf32, #tpu.memory_space<vmem>>, vector<1x8x128xf32>
    %4 = vector.shape_cast %3 : vector<1x8x128xf32> to vector<8x128xf32>
    %c0_3 = arith.constant 0 : index
    %c0_4 = arith.constant 0 : index
    %5 = vector.load %arg6[%c0_3, %c0_4] : memref<8x128xf32, #tpu.memory_space<vmem>>, vector<8x128xf32>
    %c0_5 = arith.constant 0 : index
    %c0_6 = arith.constant 0 : index
    %6 = vector.load %arg3[%c0_5, %c0_6] : memref<768x384xf32, #tpu.memory_space<vmem>>, vector<128x128xf32>
    %cst = arith.constant dense<0.000000e+00> : vector<8x128xf32>
    %7 = tpu.matmul %4, %6, %cst {dimension_numbers = #tpu.dot_dimension_numbers<[1], [0], [0], [1], [0, 0, 1, 1], [], []>} : vector<8x128xf32>, vector<128x128xf32>, vector<8x128xf32> -> vector<8x128xf32>
    %c0_7 = arith.constant 0 : index
    %c0_8 = arith.constant 0 : index
    %8 = vector.load %arg4[%c0_7, %c0_8] : memref<8x384xf32, #tpu.memory_space<vmem>>, vector<1x128xf32>
    %9 = vector.broadcast %8 : vector<1x128xf32> to vector<8x128xf32>
    %10 = arith.addf %7, %9 : vector<8x128xf32>
    %cst_9 = arith.constant 0.000000e+00 : f32
    %11 = vector.broadcast %cst_9 : f32 to vector<8x128xf32>
    %12 = arith.maximumf %10, %11 : vector<8x128xf32>
    %c128 = arith.constant 128 : index
    %c0_10 = arith.constant 0 : index
    %13 = vector.load %arg3[%c128, %c0_10] : memref<768x384xf32, #tpu.memory_space<vmem>>, vector<128x384xf32>
    %cst_11 = arith.constant dense<0.000000e+00> : vector<8x384xf32>
    %14 = tpu.matmul %12, %13, %cst_11 {dimension_numbers = #tpu.dot_dimension_numbers<[1], [0], [0], [1], [0, 0, 1, 1], [], []>} : vector<8x128xf32>, vector<128x384xf32>, vector<8x384xf32> -> vector<8x384xf32>
    %c1 = arith.constant 1 : index
    %c0_12 = arith.constant 0 : index
    %15 = vector.load %arg4[%c1, %c0_12] : memref<8x384xf32, #tpu.memory_space<vmem>>, vector<1x384xf32>
    %16 = vector.broadcast %15 : vector<1x384xf32> to vector<8x384xf32>
    %17 = arith.addf %14, %16 : vector<8x384xf32>
    %c256 = arith.constant 256 : index
    %c0_13 = arith.constant 0 : index
    %18 = vector.load %arg3[%c256, %c0_13] : memref<768x384xf32, #tpu.memory_space<vmem>>, vector<128x384xf32>
    %cst_14 = arith.constant dense<0.000000e+00> : vector<8x384xf32>
    %19 = tpu.matmul %5, %18, %cst_14 {dimension_numbers = #tpu.dot_dimension_numbers<[1], [0], [0], [1], [0, 0, 1, 1], [], []>} : vector<8x128xf32>, vector<128x384xf32>, vector<8x384xf32> -> vector<8x384xf32>
    %c2 = arith.constant 2 : index
    %c0_15 = arith.constant 0 : index
    %20 = vector.load %arg4[%c2, %c0_15] : memref<8x384xf32, #tpu.memory_space<vmem>>, vector<1x384xf32>
    %21 = vector.broadcast %20 : vector<1x384xf32> to vector<8x384xf32>
    %22 = arith.addf %19, %21 : vector<8x384xf32>
    %23 = vector.extract_strided_slice %17 {offsets = [0, 0], sizes = [8, 128], strides = [1, 1]} : vector<8x384xf32> to vector<8x128xf32>
    %24 = vector.extract_strided_slice %22 {offsets = [0, 0], sizes = [8, 128], strides = [1, 1]} : vector<8x384xf32> to vector<8x128xf32>
    %25 = arith.addf %23, %24 : vector<8x128xf32>
    %26 = arith.negf %25 : vector<8x128xf32>
    %27 = math.exp %26 : vector<8x128xf32>
    %cst_16 = arith.constant 1.000000e+00 : f32
    %28 = vector.broadcast %cst_16 : f32 to vector<8x128xf32>
    %29 = arith.addf %28, %27 : vector<8x128xf32>
    %30 = arith.divf %28, %29 : vector<8x128xf32>
    %31 = vector.extract_strided_slice %17 {offsets = [0, 128], sizes = [8, 128], strides = [1, 1]} : vector<8x384xf32> to vector<8x128xf32>
    %32 = vector.extract_strided_slice %22 {offsets = [0, 128], sizes = [8, 128], strides = [1, 1]} : vector<8x384xf32> to vector<8x128xf32>
    %33 = arith.addf %31, %32 : vector<8x128xf32>
    %34 = arith.negf %33 : vector<8x128xf32>
    %35 = math.exp %34 : vector<8x128xf32>
    %cst_17 = arith.constant 1.000000e+00 : f32
    %36 = vector.broadcast %cst_17 : f32 to vector<8x128xf32>
    %37 = arith.addf %36, %35 : vector<8x128xf32>
    %38 = arith.divf %36, %37 : vector<8x128xf32>
    %39 = vector.extract_strided_slice %17 {offsets = [0, 256], sizes = [8, 128], strides = [1, 1]} : vector<8x384xf32> to vector<8x128xf32>
    %40 = vector.extract_strided_slice %22 {offsets = [0, 256], sizes = [8, 128], strides = [1, 1]} : vector<8x384xf32> to vector<8x128xf32>
    %41 = arith.mulf %30, %40 : vector<8x128xf32>
    %42 = arith.addf %39, %41 : vector<8x128xf32>
    %43 = math.tanh %42 : vector<8x128xf32>
    %cst_18 = arith.constant 1.000000e+00 : f32
    %44 = vector.broadcast %cst_18 : f32 to vector<8x128xf32>
    %45 = arith.subf %44, %38 : vector<8x128xf32>
    %46 = arith.mulf %45, %43 : vector<8x128xf32>
    %47 = arith.mulf %38, %5 : vector<8x128xf32>
    %48 = arith.addf %46, %47 : vector<8x128xf32>
    %c0_19 = arith.constant 0 : index
    %c0_20 = arith.constant 0 : index
    %49 = vector.load %arg6[%c0_19, %c0_20] : memref<8x128xf32, #tpu.memory_space<vmem>>, vector<8x128xf32>
    tpu.vector_store %arg6[%c0_19, %c0_20], %48 {strides = array<i32>} : memref<8x128xf32, #tpu.memory_space<vmem>>, vector<8x128xf32>,
    %c384 = arith.constant 384 : index
    %c0_21 = arith.constant 0 : index
    %50 = vector.load %arg3[%c384, %c0_21] : memref<768x384xf32, #tpu.memory_space<vmem>>, vector<128x256xf32>
    %cst_22 = arith.constant dense<0.000000e+00> : vector<8x256xf32>
    %51 = tpu.matmul %48, %50, %cst_22 {dimension_numbers = #tpu.dot_dimension_numbers<[1], [0], [0], [1], [0, 0, 1, 1], [], []>} : vector<8x128xf32>, vector<128x256xf32>, vector<8x256xf32> -> vector<8x256xf32>
    %c3 = arith.constant 3 : index
    %c0_23 = arith.constant 0 : index
    %52 = vector.load %arg4[%c3, %c0_23] : memref<8x384xf32, #tpu.memory_space<vmem>>, vector<1x256xf32>
    %53 = vector.broadcast %52 : vector<1x256xf32> to vector<8x256xf32>
    %54 = arith.addf %51, %53 : vector<8x256xf32>
    %55 = vector.extract_strided_slice %54 {offsets = [0, 0], sizes = [8, 128], strides = [1, 1]} : vector<8x256xf32> to vector<8x128xf32>
    %56 = vector.extract_strided_slice %54 {offsets = [0, 128], sizes = [8, 128], strides = [1, 1]} : vector<8x256xf32> to vector<8x128xf32>
    %cst_24 = arith.constant 0.000000e+00 : f32
    %57 = vector.broadcast %cst_24 : f32 to vector<8x128xf32>
    %58 = arith.maximumf %56, %57 : vector<8x128xf32>
    %c512 = arith.constant 512 : index
    %c0_25 = arith.constant 0 : index
    %59 = vector.load %arg3[%c512, %c0_25] : memref<768x384xf32, #tpu.memory_space<vmem>>, vector<128x128xf32>
    %cst_26 = arith.constant dense<0.000000e+00> : vector<8x128xf32>
    %60 = tpu.matmul %58, %59, %cst_26 {dimension_numbers = #tpu.dot_dimension_numbers<[1], [0], [0], [1], [0, 0, 1, 1], [], []>} : vector<8x128xf32>, vector<128x128xf32>, vector<8x128xf32> -> vector<8x128xf32>
    %c4 = arith.constant 4 : index
    %c0_27 = arith.constant 0 : index
    %61 = vector.load %arg4[%c4, %c0_27] : memref<8x384xf32, #tpu.memory_space<vmem>>, vector<1x128xf32>
    %62 = vector.broadcast %61 : vector<1x128xf32> to vector<8x128xf32>
    %63 = arith.addf %60, %62 : vector<8x128xf32>
    %cst_28 = arith.constant 0.000000e+00 : f32
    %64 = vector.broadcast %cst_28 : f32 to vector<8x128xf32>
    %65 = arith.maximumf %63, %64 : vector<8x128xf32>
    %c640 = arith.constant 640 : index
    %c0_29 = arith.constant 0 : index
    %66 = vector.load %arg3[%c640, %c0_29] : memref<768x384xf32, #tpu.memory_space<vmem>>, vector<128x384xf32>
    %cst_30 = arith.constant dense<0.000000e+00> : vector<8x384xf32>
    %67 = tpu.matmul %65, %66, %cst_30 {dimension_numbers = #tpu.dot_dimension_numbers<[1], [0], [0], [1], [0, 0, 1, 1], [], []>} : vector<8x128xf32>, vector<128x384xf32>, vector<8x384xf32> -> vector<8x384xf32>
    %c5 = arith.constant 5 : index
    %c0_31 = arith.constant 0 : index
    %68 = vector.load %arg4[%c5, %c0_31] : memref<8x384xf32, #tpu.memory_space<vmem>>, vector<1x384xf32>
    %69 = vector.broadcast %68 : vector<1x384xf32> to vector<8x384xf32>
    %70 = arith.addf %67, %69 : vector<8x384xf32>
    %71 = vector.extract_strided_slice %70 {offsets = [0, 0], sizes = [8, 128], strides = [1, 1]} : vector<8x384xf32> to vector<8x128xf32>
    %72 = vector.extract_strided_slice %70 {offsets = [0, 128], sizes = [8, 128], strides = [1, 1]} : vector<8x384xf32> to vector<8x128xf32>
    %73 = vector.extract_strided_slice %70 {offsets = [0, 256], sizes = [8, 128], strides = [1, 1]} : vector<8x384xf32> to vector<8x128xf32>
    %74 = arith.addf %55, %71 : vector<8x128xf32>
    %c0_32 = arith.constant 0 : index
    %c0_33 = arith.constant 0 : index
    %c0_34 = arith.constant 0 : index
    %75 = vector.load %arg5[%c0_32, %c0_33, %c0_34] : memref<1x8x640xf32, #tpu.memory_space<vmem>>, vector<1x8x128xf32>
    %76 = vector.shape_cast %75 : vector<1x8x128xf32> to vector<8x128xf32>
    %77 = vector.shape_cast %74 : vector<8x128xf32> to vector<1x8x128xf32>
    tpu.vector_store %arg5[%c0_32, %c0_33, %c0_34], %77 {strides = array<i32>} : memref<1x8x640xf32, #tpu.memory_space<vmem>>, vector<1x8x128xf32>,
    %c0_35 = arith.constant 0 : index
    %c0_36 = arith.constant 0 : index
    %c128_37 = arith.constant 128 : index
    %78 = vector.load %arg5[%c0_35, %c0_36, %c128_37] : memref<1x8x640xf32, #tpu.memory_space<vmem>>, vector<1x8x128xf32>
    %79 = vector.shape_cast %78 : vector<1x8x128xf32> to vector<8x128xf32>
    %80 = vector.shape_cast %48 : vector<8x128xf32> to vector<1x8x128xf32>
    tpu.vector_store %arg5[%c0_35, %c0_36, %c128_37], %80 {strides = array<i32>} : memref<1x8x640xf32, #tpu.memory_space<vmem>>, vector<1x8x128xf32>,
    %c0_38 = arith.constant 0 : index
    %c0_39 = arith.constant 0 : index
    %c256_40 = arith.constant 256 : index
    %81 = vector.load %arg5[%c0_38, %c0_39, %c256_40] : memref<1x8x640xf32, #tpu.memory_space<vmem>>, vector<1x8x128xf32>
    %82 = vector.shape_cast %81 : vector<1x8x128xf32> to vector<8x128xf32>
    %83 = vector.shape_cast %71 : vector<8x128xf32> to vector<1x8x128xf32>
    tpu.vector_store %arg5[%c0_38, %c0_39, %c256_40], %83 {strides = array<i32>} : memref<1x8x640xf32, #tpu.memory_space<vmem>>, vector<1x8x128xf32>,
    %c0_41 = arith.constant 0 : index
    %c0_42 = arith.constant 0 : index
    %c384_43 = arith.constant 384 : index
    %84 = vector.load %arg5[%c0_41, %c0_42, %c384_43] : memref<1x8x640xf32, #tpu.memory_space<vmem>>, vector<1x8x128xf32>
    %85 = vector.shape_cast %84 : vector<1x8x128xf32> to vector<8x128xf32>
    %86 = vector.shape_cast %72 : vector<8x128xf32> to vector<1x8x128xf32>
    tpu.vector_store %arg5[%c0_41, %c0_42, %c384_43], %86 {strides = array<i32>} : memref<1x8x640xf32, #tpu.memory_space<vmem>>, vector<1x8x128xf32>,
    %c0_44 = arith.constant 0 : index
    %c0_45 = arith.constant 0 : index
    %c512_46 = arith.constant 512 : index
    %87 = vector.load %arg5[%c0_44, %c0_45, %c512_46] : memref<1x8x640xf32, #tpu.memory_space<vmem>>, vector<1x8x128xf32>
    %88 = vector.shape_cast %87 : vector<1x8x128xf32> to vector<8x128xf32>
    %89 = vector.shape_cast %73 : vector<8x128xf32> to vector<1x8x128xf32>
    tpu.vector_store %arg5[%c0_44, %c0_45, %c512_46], %89 {strides = array<i32>} : memref<1x8x640xf32, #tpu.memory_space<vmem>>, vector<1x8x128xf32>,
    return
  }
  func.func @transform_0(%arg0: i32) -> (i32, i32, i32) {
    %c0_i32 = arith.constant 0 : i32
    %c0_i32_0 = arith.constant 0 : i32
    %c0_i32_1 = arith.constant 0 : i32
    return %arg0, %c0_i32, %c0_i32_0 : i32, i32, i32
  }
  func.func @transform_1(%arg0: i32) -> (i32, i32) {
    %c0_i32 = arith.constant 0 : i32
    %c0_i32_0 = arith.constant 0 : i32
    %c0_i32_1 = arith.constant 0 : i32
    return %c0_i32, %c0_i32_0 : i32, i32
  }
  func.func @transform_2(%arg0: i32) -> (i32, i32) {
    %c0_i32 = arith.constant 0 : i32
    %c0_i32_0 = arith.constant 0 : i32
    %c0_i32_1 = arith.constant 0 : i32
    return %c0_i32, %c0_i32_0 : i32, i32
  }
  func.func @transform_3(%arg0: i32) -> (i32, i32) {
    %c0_i32 = arith.constant 0 : i32
    %c0_i32_0 = arith.constant 0 : i32
    %c0_i32_1 = arith.constant 0 : i32
    return %c0_i32, %c0_i32_0 : i32, i32
  }
  func.func @transform_4(%arg0: i32) -> (i32, i32, i32) {
    %c0_i32 = arith.constant 0 : i32
    %c0_i32_0 = arith.constant 0 : i32
    %c0_i32_1 = arith.constant 0 : i32
    return %arg0, %c0_i32, %c0_i32_0 : i32, i32, i32
  }
}

</mosaic_0001>

<llo_original>
// kernel: tpu_custom_call.1
$region0: #{tpu_custom_call.1}
  #allocation0 [shape = 'u32[]', space=smem, size = 0x4, offset = 0x4, fixed_abs, tag = 'smem constant byte address 0x4 - core index']
  #allocation1 [shape = 'u32[144,128]{1,0:T(1,128)}', space=vmem, size = 0x12000, scoped, tag = 'internal scratch']
  #allocation2 [shape = 'f32[8,128]{1,0:T(8,128)}', space=vmem, size = 0x1000, scoped, tag = 'scratch operand']
  %s0 = inlined_call_operand.hbm [shape: f32[1,8,128], index: 0, kind: input, shape index: {}]
  %s1 = inlined_call_operand.hbm [shape: f32[8,128], index: 1, kind: input, shape index: {}]
  %s2 = inlined_call_operand.hbm [shape: f32[768,384], index: 2, kind: input, shape index: {}]
  %s3 = inlined_call_operand.hbm [shape: f32[8,384], index: 3, kind: input, shape index: {}]
  %s4 = inlined_call_operand.hbm [shape: f32[1,8,640], index: 4, kind: output, shape index: {}]
  %s5 = sld [smem:[#allocation0]]
  $region46: #{tpu_custom_call.1} parent=0
    _
  %s7 = ssub.s32 1, %s5
  %s8 = scalar_select 0, %s7, %s5
  $region1: #{tpu_custom_call.1} parent=0
    #allocation3 [shape = 'u8[4096]{0}', space=vmem, size = 0x1000, scoped, tag = 'input window, operand 0, single buffered']
    #allocation4 [shape = 's32[1]{0}', space=sflag, size = 0x4, scoped, tag = 'scoped memory for tpu_custom_call.1']
    #allocation5 [shape = 's32[1]{0}', space=sflag, size = 0x4, scoped, tag = 'scoped memory for tpu_custom_call.1']
    #allocation6 [shape = 'u8[4096]{0}', space=vmem, size = 0x1000, scoped, tag = 'input window, operand 1, single buffered']
    #allocation7 [shape = 's32[1]{0}', space=sflag, size = 0x4, scoped, tag = 'scoped memory for tpu_custom_call.1']
    #allocation8 [shape = 'u8[1179648]{0}', space=vmem, size = 0x120000, scoped, tag = 'input window, operand 2, single buffered']
    #allocation9 [shape = 'u8[12288]{0}', space=vmem, size = 0x3000, scoped, tag = 'input window, operand 3, single buffered']
    #allocation10 [shape = 's32[1]{0}', space=sflag, size = 0x4, scoped, tag = 'scoped memory for tpu_custom_call.1']
    #allocation11 [shape = 'u8[20480]{0}', space=vmem, size = 0x5000, scoped, tag = 'output window, operand 0, single buffered']
    %9 = vsyncpa [#allocation4], 0
    %10 = vsyncpa [#allocation7], 0
    %11 = vsyncpa [#allocation10], 0
    %12 = vsyncpa [#allocation5], 0
    // Predicated region
    $region2: #{tpu_custom_call.1} parent=1 // pred_check
      _
    $region3: #{tpu_custom_call.1} parent=1 // pred_check_branch
      %14 = sbr.rel (0) target = $region5
    $region4: #{tpu_custom_call.1} parent=1 // pred_region
      %s16 = ssub.s32 128, 128
      %17 = vsyncadd [#allocation4], %s16
      %s19 = sshll.u32 [#allocation3], 4
      %s20 = int_to_ptr.vmem [resolvable:$true] %s19
      %22 = dma.hbm_to_vmem [thread:$0]  %s0, 128, %s20, [#allocation4]
    $region5: #{tpu_custom_call.1} parent=1 // pred_fallthru
      _
    // Predicated region
    $region6: #{tpu_custom_call.1} parent=1 // pred_check
      _
    $region7: #{tpu_custom_call.1} parent=1 // pred_check_branch
      %24 = sbr.rel (0) target = $region9
    $region8: #{tpu_custom_call.1} parent=1 // pred_region
      %s26 = ssub.s32 128, 128
      %27 = vsyncadd [#allocation7], %s26
      %s29 = sshll.u32 [#allocation6], 4
      %s30 = int_to_ptr.vmem [resolvable:$true] %s29
      %32 = dma.hbm_to_vmem [thread:$0]  %s1, 128, %s30, [#allocation7]
    $region9: #{tpu_custom_call.1} parent=1 // pred_fallthru
      _
    // Predicated region
    $region10: #{tpu_custom_call.1} parent=1 // pred_check
      _
    $region11: #{tpu_custom_call.1} parent=1 // pred_check_branch
      %34 = sbr.rel (0) target = $region13
    $region12: #{tpu_custom_call.1} parent=1 // pred_region
      %s36 = ssub.s32 36864, 36864
      %37 = vsyncadd [#allocation7], %s36
      %s38 = sshll.u32 [#allocation8], 4
      %s39 = int_to_ptr.vmem [resolvable:$true] %s38
      %44 = dma.hbm_to_vmem [thread:$0]  %s2, 36864, %s39, [#allocation7], 384, 384, 24
    $region13: #{tpu_custom_call.1} parent=1 // pred_fallthru
      _
    // Predicated region
    $region14: #{tpu_custom_call.1} parent=1 // pred_check
      _
    $region15: #{tpu_custom_call.1} parent=1 // pred_check_branch
      %46 = sbr.rel (0) target = $region17
    $region16: #{tpu_custom_call.1} parent=1 // pred_region
      %s48 = ssub.s32 384, 384
      %49 = vsyncadd [#allocation10], %s48
      %s51 = sshll.u32 [#allocation9], 4
      %s52 = int_to_ptr.vmem [resolvable:$true] %s51
      %54 = dma.hbm_to_vmem [thread:$0]  %s3, 384, %s52, [#allocation10]
    $region17: #{tpu_custom_call.1} parent=1 // pred_fallthru
      _
    // Predicated region
    $region18: #{tpu_custom_call.1} parent=1 // pred_check
      _
    $region19: #{tpu_custom_call.1} parent=1 // pred_check_branch
      %56 = sbr.rel (0) target = $region21
    $region20: #{tpu_custom_call.1} parent=1 // pred_region
      %57 = dma.done [#allocation4], 128
    $region21: #{tpu_custom_call.1} parent=1 // pred_fallthru
      _
    // Predicated region
    $region22: #{tpu_custom_call.1} parent=1 // pred_check
      _
    $region23: #{tpu_custom_call.1} parent=1 // pred_check_branch
      %59 = sbr.rel (0) target = $region25
    $region24: #{tpu_custom_call.1} parent=1 // pred_region
      %60 = dma.done [#allocation7], 128
    $region25: #{tpu_custom_call.1} parent=1 // pred_fallthru
      _
    // Predicated region
    $region26: #{tpu_custom_call.1} parent=1 // pred_check
      _
    $region27: #{tpu_custom_call.1} parent=1 // pred_check_branch
      %62 = sbr.rel (0) target = $region29
    $region28: #{tpu_custom_call.1} parent=1 // pred_region
      %63 = dma.done [#allocation7], 36864
    $region29: #{tpu_custom_call.1} parent=1 // pred_fallthru
      _
    // Predicated region
    $region30: #{tpu_custom_call.1} parent=1 // pred_check
      _
    $region31: #{tpu_custom_call.1} parent=1 // pred_check_branch
      %65 = sbr.rel (0) target = $region33
    $region32: #{tpu_custom_call.1} parent=1 // pred_region
      %66 = dma.done [#allocation10], 384
    $region33: #{tpu_custom_call.1} parent=1 // pred_fallthru
      _
    %p67 = scmp.eq.s32.totalorder 0, 0
    // Predicated region
    $region34: #{tpu_custom_call.1} parent=1 // pred_check
      %p68 = pneg %p67
    $region35: #{tpu_custom_call.1} parent=1 // pred_check_branch
      %70 = sbr.rel (%p68) target = $region37
    $region36: #{tpu_custom_call.1} parent=1 // pred_region
      %v71 = vld [vmem:[#allocation6] sm:$0xff]
      %72 = vst [vmem:[#allocation2] sm:$0xff] %v71
    $region37: #{tpu_custom_call.1} parent=1 // pred_fallthru
      _
    %v73 = vld [vmem:[#allocation3] sm:$0xff]
    %v74 = vld [vmem:[#allocation2] sm:$0xff]
    %v75 = vld [vmem:[#allocation8] sm:$0xff]
    %v76 = vld [vmem:[#allocation8 + $0x18] sm:$0xff]
    %v77 = vld [vmem:[#allocation8 + $0x30] sm:$0xff]
    %v78 = vld [vmem:[#allocation8 + $0x48] sm:$0xff]
    %v79 = vld [vmem:[#allocation8 + $0x60] sm:$0xff]
    %v80 = vld [vmem:[#allocation8 + $0x78] sm:$0xff]
    %v81 = vld [vmem:[#allocation8 + $0x90] sm:$0xff]
    %v82 = vld [vmem:[#allocation8 + $0xa8] sm:$0xff]
    %v83 = vld [vmem:[#allocation8 + $0xc0] sm:$0xff]
    %v84 = vld [vmem:[#allocation8 + $0xd8] sm:$0xff]
    %v85 = vld [vmem:[#allocation8 + $0xf0] sm:$0xff]
    %v86 = vld [vmem:[#allocation8 + $0x108] sm:$0xff]
    %v87 = vld [vmem:[#allocation8 + $0x120] sm:$0xff]
    %v88 = vld [vmem:[#allocation8 + $0x138] sm:$0xff]
    %v89 = vld [vmem:[#allocation8 + $0x150] sm:$0xff]
    %v90 = vld [vmem:[#allocation8 + $0x168] sm:$0xff]
    %v91 = vld [vmem:[#allocation9] ss:$0 sm:$0xff]
    %92 = vmatprep.subr.mxu0 0.0
    %93 = vmatpush1.msra.mxu0 %v75
    %94 = vmatprep.subr.mxu0 0.0
    %95 = vmatpush1.msra.mxu0 %v76
    %96 = vmatprep.subr.mxu0 0.0
    %97 = vmatpush1.msra.mxu0 %v77
    %98 = vmatprep.subr.mxu0 0.0
    %99 = vmatpush1.msra.mxu0 %v78
    %100 = vmatprep.subr.mxu0 0.0
    %101 = vmatpush1.msra.mxu0 %v79
    %102 = vmatprep.subr.mxu0 0.0
    %103 = vmatpush1.msra.mxu0 %v80
    %104 = vmatprep.subr.mxu0 0.0
    %105 = vmatpush1.msra.mxu0 %v81
    %106 = vmatprep.subr.mxu0 0.0
    %107 = vmatpush1.msra.mxu0 %v82
    %108 = vmatprep.subr.mxu0 0.0
    %109 = vmatpush1.msra.mxu0 %v83
    %110 = vmatprep.subr.mxu0 0.0
    %111 = vmatpush1.msra.mxu0 %v84
    %112 = vmatprep.subr.mxu0 0.0
    %113 = vmatpush1.msra.mxu0 %v85
    %114 = vmatprep.subr.mxu0 0.0
    %115 = vmatpush1.msra.mxu0 %v86
    %116 = vmatprep.subr.mxu0 0.0
    %117 = vmatpush1.msra.mxu0 %v87
    %118 = vmatprep.subr.mxu0 0.0
    %119 = vmatpush1.msra.mxu0 %v88
    %120 = vmatprep.subr.mxu0 0.0
    %121 = vmatpush1.msra.mxu0 %v89
    %122 = vmatprep.subr.mxu0 0.0
    %123 = vmatpush1.msra.mxu0 %v90
    %124 = vmatprep.subr.mxu0 0.0
    %125 = vmatpush1.msra.mxu0 0.0
    %126 = vmatprep.subr.mxu0 0.0
    %127 = vmatpush1.msra.mxu0 0.0
    %128 = vmatprep.subr.mxu0 0.0
    %129 = vmatpush1.msra.mxu0 0.0
    %130 = vmatprep.subr.mxu0 0.0
    %131 = vmatpush1.msra.mxu0 0.0
    %132 = vmatprep.subr.mxu0 0.0
    %133 = vmatpush1.msra.mxu0 0.0
    %134 = vmatprep.subr.mxu0 0.0
    %135 = vmatpush1.msra.mxu0 0.0
    %136 = vmatprep.subr.mxu0 0.0
    %137 = vmatpush1.msra.mxu0 0.0
    %138 = vmatprep.subr.mxu0 0.0
    %139 = vmatpush1.msra.mxu0 0.0
    %140 = vmatprep.subr.mxu0 0.0
    %141 = vmatpush1.msra.mxu0 0.0
    %142 = vmatprep.subr.mxu0 0.0
    %143 = vmatpush1.msra.mxu0 0.0
    %144 = vmatprep.subr.mxu0 0.0
    %145 = vmatpush1.msra.mxu0 0.0
    %146 = vmatprep.subr.mxu0 0.0
    %147 = vmatpush1.msra.mxu0 0.0
    %148 = vmatprep.subr.mxu0 0.0
    %149 = vmatpush1.msra.mxu0 0.0
    %150 = vmatprep.subr.mxu0 0.0
    %151 = vmatpush1.msra.mxu0 0.0
    %152 = vmatprep.subr.mxu0 0.0
    %153 = vmatpush1.msra.mxu0 0.0
    %154 = vmatprep.subr.mxu0 0.0
    %155 = vmatpush1.msra.mxu0 0.0
    %156 = vmatprep.mubr.f32.mxu0 0.0
    %157 = vmatmul.mubr.f32.gmra.mrb[0].mxu0 %v73
    %v158 = vpop.f32.mrb[0].mxu0
    %v159 = vadd.f32 %v91, %v158
    %v160 = vpop.f32.mrb[0].mxu0
    %161 = vdwg.mxu0
    %v162 = vmax.f32 %v159, 0.0
    %v163 = vld [vmem:[#allocation8 + $0x180] sm:$0xff]
    %v164 = vld [vmem:[#allocation8 + $0x188] sm:$0xff]
    %v165 = vld [vmem:[#allocation8 + $0x190] sm:$0xff]
    %v166 = vld [vmem:[#allocation8 + $0x198] sm:$0xff]
    %v167 = vld [vmem:[#allocation8 + $0x1a0] sm:$0xff]
    %v168 = vld [vmem:[#allocation8 + $0x1a8] sm:$0xff]
    %v169 = vld [vmem:[#allocation8 + $0x1b0] sm:$0xff]
    %v170 = vld [vmem:[#allocation8 + $0x1b8] sm:$0xff]
    %v171 = vld [vmem:[#allocation8 + $0x1c0] sm:$0xff]
    %v172 = vld [vmem:[#allocation8 + $0x1c8] sm:$0xff]
    %v173 = vld [vmem:[#allocation8 + $0x1d0] sm:$0xff]
    %v174 = vld [vmem:[#allocation8 + $0x1d8] sm:$0xff]
    %v175 = vld [vmem:[#allocation8 + $0x1e0] sm:$0xff]
    %v176 = vld [vmem:[#allocation8 + $0x1e8] sm:$0xff]
    %v177 = vld [vmem:[#allocation8 + $0x1f0] sm:$0xff]
    %v178 = vld [vmem:[#allocation8 + $0x1f8] sm:$0xff]
    %v179 = vld [vmem:[#allocation8 + $0x200] sm:$0xff]
    %v180 = vld [vmem:[#allocation8 + $0x208] sm:$0xff]
    %v181 = vld [vmem:[#allocation8 + $0x210] sm:$0xff]
    %v182 = vld [vmem:[#allocation8 + $0x218] sm:$0xff]
    %v183 = vld [vmem:[#allocation8 + $0x220] sm:$0xff]
    %v184 = vld [vmem:[#allocation8 + $0x228] sm:$0xff]
    %v185 = vld [vmem:[#allocation8 + $0x230] sm:$0xff]
    %v186 = vld [vmem:[#allocation8 + $0x238] sm:$0xff]
    %v187 = vld [vmem:[#allocation8 + $0x240] sm:$0xff]
    %v188 = vld [vmem:[#allocation8 + $0x248] sm:$0xff]
    %v189 = vld [vmem:[#allocation8 + $0x250] sm:$0xff]
    %v190 = vld [vmem:[#allocation8 + $0x258] sm:$0xff]
    %v191 = vld [vmem:[#allocation8 + $0x260] sm:$0xff]
    %v192 = vld [vmem:[#allocation8 + $0x268] sm:$0xff]
    %v193 = vld [vmem:[#allocation8 + $0x270] sm:$0xff]
    %v194 = vld [vmem:[#allocation8 + $0x278] sm:$0xff]
    %v195 = vld [vmem:[#allocation8 + $0x280] sm:$0xff]
    %v196 = vld [vmem:[#allocation8 + $0x288] sm:$0xff]
    %v197 = vld [vmem:[#allocation8 + $0x290] sm:$0xff]
    %v198 = vld [vmem:[#allocation8 + $0x298] sm:$0xff]
    %v199 = vld [vmem:[#allocation8 + $0x2a0] sm:$0xff]
    %v200 = vld [vmem:[#allocation8 + $0x2a8] sm:$0xff]
    %v201 = vld [vmem:[#allocation8 + $0x2b0] sm:$0xff]
    %v202 = vld [vmem:[#allocation8 + $0x2b8] sm:$0xff]
    %v203 = vld [vmem:[#allocation8 + $0x2c0] sm:$0xff]
    %v204 = vld [vmem:[#allocation8 + $0x2c8] sm:$0xff]
    %v205 = vld [vmem:[#allocation8 + $0x2d0] sm:$0xff]
    %v206 = vld [vmem:[#allocation8 + $0x2d8] sm:$0xff]
    %v207 = vld [vmem:[#allocation8 + $0x2e0] sm:$0xff]
    %v208 = vld [vmem:[#allocation8 + $0x2e8] sm:$0xff]
    %v209 = vld [vmem:[#allocation8 + $0x2f0] sm:$0xff]
    %v210 = vld [vmem:[#allocation8 + $0x2f8] sm:$0xff]
    %s211 = scalar_lea.vmem [#allocation9], 1
    %v212 = vld [vmem:[%s211] ss:$8 sm:$0x7]
    %v214 = vlaneseq
    %v215 = vshrl.u32 %v214, 7
    %v216 = vsub.s32 0, %v215
    %v217 = vrot.slane %v212, %v216
    %v218 = vlaneseq
    %v219 = vshrl.u32 %v218, 7
    %v220 = vsub.s32 1, %v219
    %v221 = vrot.slane %v212, %v220
    %v222 = vlaneseq
    %v223 = vshrl.u32 %v222, 7
    %v224 = vsub.s32 2, %v223
    %v225 = vrot.slane %v212, %v224
    %229 = vmatprep.subr.mxu0 %v164
    %230 = vmatpush1.msra.mxu0 %v163
    %231 = vmatprep.subr.mxu0 %v167
    %232 = vmatpush1.msra.mxu0 %v166
    %233 = vmatprep.subr.mxu0 %v170
    %234 = vmatpush1.msra.mxu0 %v169
    %235 = vmatprep.subr.mxu0 %v173
    %236 = vmatpush1.msra.mxu0 %v172
    %237 = vmatprep.subr.mxu0 %v176
    %238 = vmatpush1.msra.mxu0 %v175
    %239 = vmatprep.subr.mxu0 %v179
    %240 = vmatpush1.msra.mxu0 %v178
    %241 = vmatprep.subr.mxu0 %v182
    %242 = vmatpush1.msra.mxu0 %v181
    %243 = vmatprep.subr.mxu0 %v185
    %244 = vmatpush1.msra.mxu0 %v184
    %245 = vmatprep.subr.mxu0 %v188
    %246 = vmatpush1.msra.mxu0 %v187
    %247 = vmatprep.subr.mxu0 %v191
    %248 = vmatpush1.msra.mxu0 %v190
    %249 = vmatprep.subr.mxu0 %v194
    %250 = vmatpush1.msra.mxu0 %v193
    %251 = vmatprep.subr.mxu0 %v197
    %252 = vmatpush1.msra.mxu0 %v196
    %253 = vmatprep.subr.mxu0 %v200
    %254 = vmatpush1.msra.mxu0 %v199
    %255 = vmatprep.subr.mxu0 %v203
    %256 = vmatpush1.msra.mxu0 %v202
    %257 = vmatprep.subr.mxu0 %v206
    %258 = vmatpush1.msra.mxu0 %v205
    %259 = vmatprep.subr.mxu0 %v209
    %260 = vmatpush1.msra.mxu0 %v208
    %261 = vmatprep.subr.mxu0 0.0
    %262 = vmatpush1.msra.mxu0 0.0
    %263 = vmatprep.subr.mxu0 0.0
    %264 = vmatpush1.msra.mxu0 0.0
    %265 = vmatprep.subr.mxu0 0.0
    %266 = vmatpush1.msra.mxu0 0.0
    %267 = vmatprep.subr.mxu0 0.0
    %268 = vmatpush1.msra.mxu0 0.0
    %269 = vmatprep.subr.mxu0 0.0
    %270 = vmatpush1.msra.mxu0 0.0
    %271 = vmatprep.subr.mxu0 0.0
    %272 = vmatpush1.msra.mxu0 0.0
    %273 = vmatprep.subr.mxu0 0.0
    %274 = vmatpush1.msra.mxu0 0.0
    %275 = vmatprep.subr.mxu0 0.0
    %276 = vmatpush1.msra.mxu0 0.0
    %277 = vmatprep.subr.mxu0 0.0
    %278 = vmatpush1.msra.mxu0 0.0
    %279 = vmatprep.subr.mxu0 0.0
    %280 = vmatpush1.msra.mxu0 0.0
    %281 = vmatprep.subr.mxu0 0.0
    %282 = vmatpush1.msra.mxu0 0.0
    %283 = vmatprep.subr.mxu0 0.0
    %284 = vmatpush1.msra.mxu0 0.0
    %285 = vmatprep.subr.mxu0 0.0
    %286 = vmatpush1.msra.mxu0 0.0
    %287 = vmatprep.subr.mxu0 0.0
    %288 = vmatpush1.msra.mxu0 0.0
    %289 = vmatprep.subr.mxu0 0.0
    %290 = vmatpush1.msra.mxu0 0.0
    %291 = vmatprep.subr.mxu0 0.0
    %292 = vmatpush1.msra.mxu0 0.0
    %293 = vmatprep.mubr.f32.mxu0 0.0
    %294 = vmatmul.mubr.f32.gmra.mrb[0].mxu0 %v162
    %v295 = vpop.f32.mrb[0].mxu0
    %v296 = vadd.f32 %v217, %v295
    %v297 = vpop.f32.mrb[0].mxu0
    %v298 = vadd.f32 %v221, %v297
    %299 = vdwg.mxu0
    %300 = vmatprep.subr.mxu0 0.0
    %301 = vmatpush1.msra.mxu0 %v165
    %302 = vmatprep.subr.mxu0 0.0
    %303 = vmatpush1.msra.mxu0 %v168
    %304 = vmatprep.subr.mxu0 0.0
    %305 = vmatpush1.msra.mxu0 %v171
    %306 = vmatprep.subr.mxu0 0.0
    %307 = vmatpush1.msra.mxu0 %v174
    %308 = vmatprep.subr.mxu0 0.0
    %309 = vmatpush1.msra.mxu0 %v177
    %310 = vmatprep.subr.mxu0 0.0
    %311 = vmatpush1.msra.mxu0 %v180
    %312 = vmatprep.subr.mxu0 0.0
    %313 = vmatpush1.msra.mxu0 %v183
    %314 = vmatprep.subr.mxu0 0.0
    %315 = vmatpush1.msra.mxu0 %v186
    %316 = vmatprep.subr.mxu0 0.0
    %317 = vmatpush1.msra.mxu0 %v189
    %318 = vmatprep.subr.mxu0 0.0
    %319 = vmatpush1.msra.mxu0 %v192
    %320 = vmatprep.subr.mxu0 0.0
    %321 = vmatpush1.msra.mxu0 %v195
    %322 = vmatprep.subr.mxu0 0.0
    %323 = vmatpush1.msra.mxu0 %v198
    %324 = vmatprep.subr.mxu0 0.0
    %325 = vmatpush1.msra.mxu0 %v201
    %326 = vmatprep.subr.mxu0 0.0
    %327 = vmatpush1.msra.mxu0 %v204
    %328 = vmatprep.subr.mxu0 0.0
    %329 = vmatpush1.msra.mxu0 %v207
    %330 = vmatprep.subr.mxu0 0.0
    %331 = vmatpush1.msra.mxu0 %v210
    %332 = vmatprep.subr.mxu0 0.0
    %333 = vmatpush1.msra.mxu0 0.0
    %334 = vmatprep.subr.mxu0 0.0
    %335 = vmatpush1.msra.mxu0 0.0
    %336 = vmatprep.subr.mxu0 0.0
    %337 = vmatpush1.msra.mxu0 0.0
    %338 = vmatprep.subr.mxu0 0.0
    %339 = vmatpush1.msra.mxu0 0.0
    %340 = vmatprep.subr.mxu0 0.0
    %341 = vmatpush1.msra.mxu0 0.0
    %342 = vmatprep.subr.mxu0 0.0
    %343 = vmatpush1.msra.mxu0 0.0
    %344 = vmatprep.subr.mxu0 0.0
    %345 = vmatpush1.msra.mxu0 0.0
    %346 = vmatprep.subr.mxu0 0.0
    %347 = vmatpush1.msra.mxu0 0.0
    %348 = vmatprep.subr.mxu0 0.0
    %349 = vmatpush1.msra.mxu0 0.0
    %350 = vmatprep.subr.mxu0 0.0
    %351 = vmatpush1.msra.mxu0 0.0
    %352 = vmatprep.subr.mxu0 0.0
    %353 = vmatpush1.msra.mxu0 0.0
    %354 = vmatprep.subr.mxu0 0.0
    %355 = vmatpush1.msra.mxu0 0.0
    %356 = vmatprep.subr.mxu0 0.0
    %357 = vmatpush1.msra.mxu0 0.0
    %358 = vmatprep.subr.mxu0 0.0
    %359 = vmatpush1.msra.mxu0 0.0
    %360 = vmatprep.subr.mxu0 0.0
    %361 = vmatpush1.msra.mxu0 0.0
    %362 = vmatprep.subr.mxu0 0.0
    %363 = vmatpush1.msra.mxu0 0.0
    %364 = vmatprep.mubr.f32.mxu0 0.0
    %365 = vmatmul.mubr.f32.gmra.mrb[0].mxu0 %v162
    %v366 = vpop.f32.mrb[0].mxu0
    %v367 = vadd.f32 %v225, %v366
    %v368 = vpop.f32.mrb[0].mxu0
    %369 = vdwg.mxu0
    %v370 = vld [vmem:[#allocation8 + $0x300] sm:$0xff]
    %v371 = vld [vmem:[#allocation8 + $0x308] sm:$0xff]
    %v372 = vld [vmem:[#allocation8 + $0x310] sm:$0xff]
    %v373 = vld [vmem:[#allocation8 + $0x318] sm:$0xff]
    %v374 = vld [vmem:[#allocation8 + $0x320] sm:$0xff]
    %v375 = vld [vmem:[#allocation8 + $0x328] sm:$0xff]
    %v376 = vld [vmem:[#allocation8 + $0x330] sm:$0xff]
    %v377 = vld [vmem:[#allocation8 + $0x338] sm:$0xff]
    %v378 = vld [vmem:[#allocation8 + $0x340] sm:$0xff]
    %v379 = vld [vmem:[#allocation8 + $0x348] sm:$0xff]
    %v380 = vld [vmem:[#allocation8 + $0x350] sm:$0xff]
    %v381 = vld [vmem:[#allocation8 + $0x358] sm:$0xff]
    %v382 = vld [vmem:[#allocation8 + $0x360] sm:$0xff]
    %v383 = vld [vmem:[#allocation8 + $0x368] sm:$0xff]
    %v384 = vld [vmem:[#allocation8 + $0x370] sm:$0xff]
    %v385 = vld [vmem:[#allocation8 + $0x378] sm:$0xff]
    %v386 = vld [vmem:[#allocation8 + $0x380] sm:$0xff]
    %v387 = vld [vmem:[#allocation8 + $0x388] sm:$0xff]
    %v388 = vld [vmem:[#allocation8 + $0x390] sm:$0xff]
    %v389 = vld [vmem:[#allocation8 + $0x398] sm:$0xff]
    %v390 = vld [vmem:[#allocation8 + $0x3a0] sm:$0xff]
    %v391 = vld [vmem:[#allocation8 + $0x3a8] sm:$0xff]
    %v392 = vld [vmem:[#allocation8 + $0x3b0] sm:$0xff]
    %v393 = vld [vmem:[#allocation8 + $0x3b8] sm:$0xff]
    %v394 = vld [vmem:[#allocation8 + $0x3c0] sm:$0xff]
    %v395 = vld [vmem:[#allocation8 + $0x3c8] sm:$0xff]
    %v396 = vld [vmem:[#allocation8 + $0x3d0] sm:$0xff]
    %v397 = vld [vmem:[#allocation8 + $0x3d8] sm:$0xff]
    %v398 = vld [vmem:[#allocation8 + $0x3e0] sm:$0xff]
    %v399 = vld [vmem:[#allocation8 + $0x3e8] sm:$0xff]
    %v400 = vld [vmem:[#allocation8 + $0x3f0] sm:$0xff]
    %v401 = vld [vmem:[#allocation8 + $0x3f8] sm:$0xff]
    %v402 = vld [vmem:[#allocation8 + $0x400] sm:$0xff]
    %v403 = vld [vmem:[#allocation8 + $0x408] sm:$0xff]
    %v404 = vld [vmem:[#allocation8 + $0x410] sm:$0xff]
    %v405 = vld [vmem:[#allocation8 + $0x418] sm:$0xff]
    %v406 = vld [vmem:[#allocation8 + $0x420] sm:$0xff]
    %v407 = vld [vmem:[#allocation8 + $0x428] sm:$0xff]
    %v408 = vld [vmem:[#allocation8 + $0x430] sm:$0xff]
    %v409 = vld [vmem:[#allocation8 + $0x438] sm:$0xff]
    %v410 = vld [vmem:[#allocation8 + $0x440] sm:$0xff]
    %v411 = vld [vmem:[#allocation8 + $0x448] sm:$0xff]
    %v412 = vld [vmem:[#allocation8 + $0x450] sm:$0xff]
    %v413 = vld [vmem:[#allocation8 + $0x458] sm:$0xff]
    %v414 = vld [vmem:[#allocation8 + $0x460] sm:$0xff]
    %v415 = vld [vmem:[#allocation8 + $0x468] sm:$0xff]
    %v416 = vld [vmem:[#allocation8 + $0x470] sm:$0xff]
    %v417 = vld [vmem:[#allocation8 + $0x478] sm:$0xff]
    %s418 = scalar_lea.vmem [#allocation9], 2
    %v419 = vld [vmem:[%s418] ss:$8 sm:$0x7]
    %v421 = vlaneseq
    %v422 = vshrl.u32 %v421, 7
    %v423 = vsub.s32 0, %v422
    %v424 = vrot.slane %v419, %v423
    %v425 = vlaneseq
    %v426 = vshrl.u32 %v425, 7
    %v427 = vsub.s32 1, %v426
    %v428 = vrot.slane %v419, %v427
    %v429 = vlaneseq
    %v430 = vshrl.u32 %v429, 7
    %v431 = vsub.s32 2, %v430
    %v432 = vrot.slane %v419, %v431
    %436 = vmatprep.subr.mxu0 %v371
    %437 = vmatpush1.msra.mxu0 %v370
    %438 = vmatprep.subr.mxu0 %v374
    %439 = vmatpush1.msra.mxu0 %v373
    %440 = vmatprep.subr.mxu0 %v377
    %441 = vmatpush1.msra.mxu0 %v376
    %442 = vmatprep.subr.mxu0 %v380
    %443 = vmatpush1.msra.mxu0 %v379
    %444 = vmatprep.subr.mxu0 %v383
    %445 = vmatpush1.msra.mxu0 %v382
    %446 = vmatprep.subr.mxu0 %v386
    %447 = vmatpush1.msra.mxu0 %v385
    %448 = vmatprep.subr.mxu0 %v389
    %449 = vmatpush1.msra.mxu0 %v388
    %450 = vmatprep.subr.mxu0 %v392
    %451 = vmatpush1.msra.mxu0 %v391
    %452 = vmatprep.subr.mxu0 %v395
    %453 = vmatpush1.msra.mxu0 %v394
    %454 = vmatprep.subr.mxu0 %v398
    %455 = vmatpush1.msra.mxu0 %v397
    %456 = vmatprep.subr.mxu0 %v401
    %457 = vmatpush1.msra.mxu0 %v400
    %458 = vmatprep.subr.mxu0 %v404
    %459 = vmatpush1.msra.mxu0 %v403
    %460 = vmatprep.subr.mxu0 %v407
    %461 = vmatpush1.msra.mxu0 %v406
    %462 = vmatprep.subr.mxu0 %v410
    %463 = vmatpush1.msra.mxu0 %v409
    %464 = vmatprep.subr.mxu0 %v413
    %465 = vmatpush1.msra.mxu0 %v412
    %466 = vmatprep.subr.mxu0 %v416
    %467 = vmatpush1.msra.mxu0 %v415
    %468 = vmatprep.subr.mxu0 0.0
    %469 = vmatpush1.msra.mxu0 0.0
    %470 = vmatprep.subr.mxu0 0.0
    %471 = vmatpush1.msra.mxu0 0.0
    %472 = vmatprep.subr.mxu0 0.0
    %473 = vmatpush1.msra.mxu0 0.0
    %474 = vmatprep.subr.mxu0 0.0
    %475 = vmatpush1.msra.mxu0 0.0
    %476 = vmatprep.subr.mxu0 0.0
    %477 = vmatpush1.msra.mxu0 0.0
    %478 = vmatprep.subr.mxu0 0.0
    %479 = vmatpush1.msra.mxu0 0.0
    %480 = vmatprep.subr.mxu0 0.0
    %481 = vmatpush1.msra.mxu0 0.0
    %482 = vmatprep.subr.mxu0 0.0
    %483 = vmatpush1.msra.mxu0 0.0
    %484 = vmatprep.subr.mxu0 0.0
    %485 = vmatpush1.msra.mxu0 0.0
    %486 = vmatprep.subr.mxu0 0.0
    %487 = vmatpush1.msra.mxu0 0.0
    %488 = vmatprep.subr.mxu0 0.0
    %489 = vmatpush1.msra.mxu0 0.0
    %490 = vmatprep.subr.mxu0 0.0
    %491 = vmatpush1.msra.mxu0 0.0
    %492 = vmatprep.subr.mxu0 0.0
    %493 = vmatpush1.msra.mxu0 0.0
    %494 = vmatprep.subr.mxu0 0.0
    %495 = vmatpush1.msra.mxu0 0.0
    %496 = vmatprep.subr.mxu0 0.0
    %497 = vmatpush1.msra.mxu0 0.0
    %498 = vmatprep.subr.mxu0 0.0
    %499 = vmatpush1.msra.mxu0 0.0
    %500 = vmatprep.mubr.f32.mxu0 0.0
    %501 = vmatmul.mubr.f32.gmra.mrb[0].mxu0 %v74
    %v502 = vpop.f32.mrb[0].mxu0
    %v503 = vadd.f32 %v424, %v502
    %v504 = vpop.f32.mrb[0].mxu0
    %v505 = vadd.f32 %v428, %v504
    %506 = vdwg.mxu0
    %507 = vmatprep.subr.mxu0 0.0
    %508 = vmatpush1.msra.mxu0 %v372
    %509 = vmatprep.subr.mxu0 0.0
    %510 = vmatpush1.msra.mxu0 %v375
    %511 = vmatprep.subr.mxu0 0.0
    %512 = vmatpush1.msra.mxu0 %v378
    %513 = vmatprep.subr.mxu0 0.0
    %514 = vmatpush1.msra.mxu0 %v381
    %515 = vmatprep.subr.mxu0 0.0
    %516 = vmatpush1.msra.mxu0 %v384
    %517 = vmatprep.subr.mxu0 0.0
    %518 = vmatpush1.msra.mxu0 %v387
    %519 = vmatprep.subr.mxu0 0.0
    %520 = vmatpush1.msra.mxu0 %v390
    %521 = vmatprep.subr.mxu0 0.0
    %522 = vmatpush1.msra.mxu0 %v393
    %523 = vmatprep.subr.mxu0 0.0
    %524 = vmatpush1.msra.mxu0 %v396
    %525 = vmatprep.subr.mxu0 0.0
    %526 = vmatpush1.msra.mxu0 %v399
    %527 = vmatprep.subr.mxu0 0.0
    %528 = vmatpush1.msra.mxu0 %v402
    %529 = vmatprep.subr.mxu0 0.0
    %530 = vmatpush1.msra.mxu0 %v405
    %531 = vmatprep.subr.mxu0 0.0
    %532 = vmatpush1.msra.mxu0 %v408
    %533 = vmatprep.subr.mxu0 0.0
    %534 = vmatpush1.msra.mxu0 %v411
    %535 = vmatprep.subr.mxu0 0.0
    %536 = vmatpush1.msra.mxu0 %v414
    %537 = vmatprep.subr.mxu0 0.0
    %538 = vmatpush1.msra.mxu0 %v417
    %539 = vmatprep.subr.mxu0 0.0
    %540 = vmatpush1.msra.mxu0 0.0
    %541 = vmatprep.subr.mxu0 0.0
    %542 = vmatpush1.msra.mxu0 0.0
    %543 = vmatprep.subr.mxu0 0.0
    %544 = vmatpush1.msra.mxu0 0.0
    %545 = vmatprep.subr.mxu0 0.0
    %546 = vmatpush1.msra.mxu0 0.0
    %547 = vmatprep.subr.mxu0 0.0
    %548 = vmatpush1.msra.mxu0 0.0
    %549 = vmatprep.subr.mxu0 0.0
    %550 = vmatpush1.msra.mxu0 0.0
    %551 = vmatprep.subr.mxu0 0.0
    %552 = vmatpush1.msra.mxu0 0.0
    %553 = vmatprep.subr.mxu0 0.0
    %554 = vmatpush1.msra.mxu0 0.0
    %555 = vmatprep.subr.mxu0 0.0
    %556 = vmatpush1.msra.mxu0 0.0
    %557 = vmatprep.subr.mxu0 0.0
    %558 = vmatpush1.msra.mxu0 0.0
    %559 = vmatprep.subr.mxu0 0.0
    %560 = vmatpush1.msra.mxu0 0.0
    %561 = vmatprep.subr.mxu0 0.0
    %562 = vmatpush1.msra.mxu0 0.0
    %563 = vmatprep.subr.mxu0 0.0
    %564 = vmatpush1.msra.mxu0 0.0
    %565 = vmatprep.subr.mxu0 0.0
    %566 = vmatpush1.msra.mxu0 0.0
    %567 = vmatprep.subr.mxu0 0.0
    %568 = vmatpush1.msra.mxu0 0.0
    %569 = vmatprep.subr.mxu0 0.0
    %570 = vmatpush1.msra.mxu0 0.0
    %571 = vmatprep.mubr.f32.mxu0 0.0
    %572 = vmatmul.mubr.f32.gmra.mrb[0].mxu0 %v74
    %v573 = vpop.f32.mrb[0].mxu0
    %v574 = vadd.f32 %v432, %v573
    %v575 = vpop.f32.mrb[0].mxu0
    %576 = vdwg.mxu0
    %v577 = vadd.f32 %v296, %v503
    %v578 = vxor.u32 %v577, 2147483648
    %v579 = vmul.f32 %v578, 1.442695
    %v580 = vpow.pop %v579
    %v581 = vadd.f32 %v580, 1.0
    %v582 = vrcp.pop %v581
    %v583 = vmul.f32 1.0, %v582
    %v584 = vadd.f32 %v298, %v505
    %v585 = vxor.u32 %v584, 2147483648
    %v586 = vmul.f32 %v585, 1.442695
    %v587 = vpow.pop %v586
    %v588 = vadd.f32 %v587, 1.0
    %v589 = vrcp.pop %v588
    %v590 = vmul.f32 1.0, %v589
    %v591 = vmul.f32 %v583, %v574
    %v592 = vadd.f32 %v367, %v591
    %v593 = vtanh.pop %v592
    %v594 = vsub.f32 1.0, %v590
    %v595 = vmul.f32 %v594, %v593
    %v596 = vmul.f32 %v590, %v74
    %v597 = vadd.f32 %v595, %v596
    %598 = vst [vmem:[#allocation2] sm:$0xff] %v597
    %v599 = vld [vmem:[#allocation8 + $0x480] sm:$0xff]
    %v600 = vld [vmem:[#allocation8 + $0x488] sm:$0xff]
    %v601 = vld [vmem:[#allocation8 + $0x498] sm:$0xff]
    %v602 = vld [vmem:[#allocation8 + $0x4a0] sm:$0xff]
    %v603 = vld [vmem:[#allocation8 + $0x4b0] sm:$0xff]
    %v604 = vld [vmem:[#allocation8 + $0x4b8] sm:$0xff]
    %v605 = vld [vmem:[#allocation8 + $0x4c8] sm:$0xff]
    %v606 = vld [vmem:[#allocation8 + $0x4d0] sm:$0xff]
    %v607 = vld [vmem:[#allocation8 + $0x4e0] sm:$0xff]
    %v608 = vld [vmem:[#allocation8 + $0x4e8] sm:$0xff]
    %v609 = vld [vmem:[#allocation8 + $0x4f8] sm:$0xff]
    %v610 = vld [vmem:[#allocation8 + $0x500] sm:$0xff]
    %v611 = vld [vmem:[#allocation8 + $0x510] sm:$0xff]
    %v612 = vld [vmem:[#allocation8 + $0x518] sm:$0xff]
    %v613 = vld [vmem:[#allocation8 + $0x528] sm:$0xff]
    %v614 = vld [vmem:[#allocation8 + $0x530] sm:$0xff]
    %v615 = vld [vmem:[#allocation8 + $0x540] sm:$0xff]
    %v616 = vld [vmem:[#allocation8 + $0x548] sm:$0xff]
    %v617 = vld [vmem:[#allocation8 + $0x558] sm:$0xff]
    %v618 = vld [vmem:[#allocation8 + $0x560] sm:$0xff]
    %v619 = vld [vmem:[#allocation8 + $0x570] sm:$0xff]
    %v620 = vld [vmem:[#allocation8 + $0x578] sm:$0xff]
    %v621 = vld [vmem:[#allocation8 + $0x588] sm:$0xff]
    %v622 = vld [vmem:[#allocation8 + $0x590] sm:$0xff]
    %v623 = vld [vmem:[#allocation8 + $0x5a0] sm:$0xff]
    %v624 = vld [vmem:[#allocation8 + $0x5a8] sm:$0xff]
    %v625 = vld [vmem:[#allocation8 + $0x5b8] sm:$0xff]
    %v626 = vld [vmem:[#allocation8 + $0x5c0] sm:$0xff]
    %v627 = vld [vmem:[#allocation8 + $0x5d0] sm:$0xff]
    %v628 = vld [vmem:[#allocation8 + $0x5d8] sm:$0xff]
    %v629 = vld [vmem:[#allocation8 + $0x5e8] sm:$0xff]
    %v630 = vld [vmem:[#allocation8 + $0x5f0] sm:$0xff]
    %s631 = scalar_lea.vmem [#allocation9], 3
    %v632 = vld [vmem:[%s631] ss:$8 sm:$0x3]
    %v634 = vlaneseq
    %v635 = vshrl.u32 %v634, 7
    %v636 = vsub.s32 0, %v635
    %v637 = vrot.slane %v632, %v636
    %v638 = vlaneseq
    %v639 = vshrl.u32 %v638, 7
    %v640 = vsub.s32 1, %v639
    %v641 = vrot.slane %v632, %v640
    %644 = vmatprep.subr.mxu0 %v600
    %645 = vmatpush1.msra.mxu0 %v599
    %646 = vmatprep.subr.mxu0 %v602
    %647 = vmatpush1.msra.mxu0 %v601
    %648 = vmatprep.subr.mxu0 %v604
    %649 = vmatpush1.msra.mxu0 %v603
    %650 = vmatprep.subr.mxu0 %v606
    %651 = vmatpush1.msra.mxu0 %v605
    %652 = vmatprep.subr.mxu0 %v608
    %653 = vmatpush1.msra.mxu0 %v607
    %654 = vmatprep.subr.mxu0 %v610
    %655 = vmatpush1.msra.mxu0 %v609
    %656 = vmatprep.subr.mxu0 %v612
    %657 = vmatpush1.msra.mxu0 %v611
    %658 = vmatprep.subr.mxu0 %v614
    %659 = vmatpush1.msra.mxu0 %v613
    %660 = vmatprep.subr.mxu0 %v616
    %661 = vmatpush1.msra.mxu0 %v615
    %662 = vmatprep.subr.mxu0 %v618
    %663 = vmatpush1.msra.mxu0 %v617
    %664 = vmatprep.subr.mxu0 %v620
    %665 = vmatpush1.msra.mxu0 %v619
    %666 = vmatprep.subr.mxu0 %v622
    %667 = vmatpush1.msra.mxu0 %v621
    %668 = vmatprep.subr.mxu0 %v624
    %669 = vmatpush1.msra.mxu0 %v623
    %670 = vmatprep.subr.mxu0 %v626
    %671 = vmatpush1.msra.mxu0 %v625
    %672 = vmatprep.subr.mxu0 %v628
    %673 = vmatpush1.msra.mxu0 %v627
    %674 = vmatprep.subr.mxu0 %v630
    %675 = vmatpush1.msra.mxu0 %v629
    %676 = vmatprep.subr.mxu0 0.0
    %677 = vmatpush1.msra.mxu0 0.0
    %678 = vmatprep.subr.mxu0 0.0
    %679 = vmatpush1.msra.mxu0 0.0
    %680 = vmatprep.subr.mxu0 0.0
    %681 = vmatpush1.msra.mxu0 0.0
    %682 = vmatprep.subr.mxu0 0.0
    %683 = vmatpush1.msra.mxu0 0.0
    %684 = vmatprep.subr.mxu0 0.0
    %685 = vmatpush1.msra.mxu0 0.0
    %686 = vmatprep.subr.mxu0 0.0
    %687 = vmatpush1.msra.mxu0 0.0
    %688 = vmatprep.subr.mxu0 0.0
    %689 = vmatpush1.msra.mxu0 0.0
    %690 = vmatprep.subr.mxu0 0.0
    %691 = vmatpush1.msra.mxu0 0.0
    %692 = vmatprep.subr.mxu0 0.0
    %693 = vmatpush1.msra.mxu0 0.0
    %694 = vmatprep.subr.mxu0 0.0
    %695 = vmatpush1.msra.mxu0 0.0
    %696 = vmatprep.subr.mxu0 0.0
    %697 = vmatpush1.msra.mxu0 0.0
    %698 = vmatprep.subr.mxu0 0.0
    %699 = vmatpush1.msra.mxu0 0.0
    %700 = vmatprep.subr.mxu0 0.0
    %701 = vmatpush1.msra.mxu0 0.0
    %702 = vmatprep.subr.mxu0 0.0
    %703 = vmatpush1.msra.mxu0 0.0
    %704 = vmatprep.subr.mxu0 0.0
    %705 = vmatpush1.msra.mxu0 0.0
    %706 = vmatprep.subr.mxu0 0.0
    %707 = vmatpush1.msra.mxu0 0.0
    %708 = vmatprep.mubr.f32.mxu0 0.0
    %709 = vmatmul.mubr.f32.gmra.mrb[0].mxu0 %v597
    %v710 = vpop.f32.mrb[0].mxu0
    %v711 = vadd.f32 %v637, %v710
    %v712 = vpop.f32.mrb[0].mxu0
    %v713 = vadd.f32 %v641, %v712
    %714 = vdwg.mxu0
    %v715 = vmax.f32 %v713, 0.0
    %v716 = vld [vmem:[#allocation8 + $0x600] sm:$0xff]
    %v717 = vld [vmem:[#allocation8 + $0x618] sm:$0xff]
    %v718 = vld [vmem:[#allocation8 + $0x630] sm:$0xff]
    %v719 = vld [vmem:[#allocation8 + $0x648] sm:$0xff]
    %v720 = vld [vmem:[#allocation8 + $0x660] sm:$0xff]
    %v721 = vld [vmem:[#allocation8 + $0x678] sm:$0xff]
    %v722 = vld [vmem:[#allocation8 + $0x690] sm:$0xff]
    %v723 = vld [vmem:[#allocation8 + $0x6a8] sm:$0xff]
    %v724 = vld [vmem:[#allocation8 + $0x6c0] sm:$0xff]
    %v725 = vld [vmem:[#allocation8 + $0x6d8] sm:$0xff]
    %v726 = vld [vmem:[#allocation8 + $0x6f0] sm:$0xff]
    %v727 = vld [vmem:[#allocation8 + $0x708] sm:$0xff]
    %v728 = vld [vmem:[#allocation8 + $0x720] sm:$0xff]
    %v729 = vld [vmem:[#allocation8 + $0x738] sm:$0xff]
    %v730 = vld [vmem:[#allocation8 + $0x750] sm:$0xff]
    %v731 = vld [vmem:[#allocation8 + $0x768] sm:$0xff]
    %v732 = vld [vmem:[#allocation9 + $0x4] ss:$0 sm:$0xff]
    %733 = vmatprep.subr.mxu0 0.0
    %734 = vmatpush1.msra.mxu0 %v716
    %735 = vmatprep.subr.mxu0 0.0
    %736 = vmatpush1.msra.mxu0 %v717
    %737 = vmatprep.subr.mxu0 0.0
    %738 = vmatpush1.msra.mxu0 %v718
    %739 = vmatprep.subr.mxu0 0.0
    %740 = vmatpush1.msra.mxu0 %v719
    %741 = vmatprep.subr.mxu0 0.0
    %742 = vmatpush1.msra.mxu0 %v720
    %743 = vmatprep.subr.mxu0 0.0
    %744 = vmatpush1.msra.mxu0 %v721
    %745 = vmatprep.subr.mxu0 0.0
    %746 = vmatpush1.msra.mxu0 %v722
    %747 = vmatprep.subr.mxu0 0.0
    %748 = vmatpush1.msra.mxu0 %v723
    %749 = vmatprep.subr.mxu0 0.0
    %750 = vmatpush1.msra.mxu0 %v724
    %751 = vmatprep.subr.mxu0 0.0
    %752 = vmatpush1.msra.mxu0 %v725
    %753 = vmatprep.subr.mxu0 0.0
    %754 = vmatpush1.msra.mxu0 %v726
    %755 = vmatprep.subr.mxu0 0.0
    %756 = vmatpush1.msra.mxu0 %v727
    %757 = vmatprep.subr.mxu0 0.0
    %758 = vmatpush1.msra.mxu0 %v728
    %759 = vmatprep.subr.mxu0 0.0
    %760 = vmatpush1.msra.mxu0 %v729
    %761 = vmatprep.subr.mxu0 0.0
    %762 = vmatpush1.msra.mxu0 %v730
    %763 = vmatprep.subr.mxu0 0.0
    %764 = vmatpush1.msra.mxu0 %v731
    %765 = vmatprep.subr.mxu0 0.0
    %766 = vmatpush1.msra.mxu0 0.0
    %767 = vmatprep.subr.mxu0 0.0
    %768 = vmatpush1.msra.mxu0 0.0
    %769 = vmatprep.subr.mxu0 0.0
    %770 = vmatpush1.msra.mxu0 0.0
    %771 = vmatprep.subr.mxu0 0.0
    %772 = vmatpush1.msra.mxu0 0.0
    %773 = vmatprep.subr.mxu0 0.0
    %774 = vmatpush1.msra.mxu0 0.0
    %775 = vmatprep.subr.mxu0 0.0
    %776 = vmatpush1.msra.mxu0 0.0
    %777 = vmatprep.subr.mxu0 0.0
    %778 = vmatpush1.msra.mxu0 0.0
    %779 = vmatprep.subr.mxu0 0.0
    %780 = vmatpush1.msra.mxu0 0.0
    %781 = vmatprep.subr.mxu0 0.0
    %782 = vmatpush1.msra.mxu0 0.0
    %783 = vmatprep.subr.mxu0 0.0
    %784 = vmatpush1.msra.mxu0 0.0
    %785 = vmatprep.subr.mxu0 0.0
    %786 = vmatpush1.msra.mxu0 0.0
    %787 = vmatprep.subr.mxu0 0.0
    %788 = vmatpush1.msra.mxu0 0.0
    %789 = vmatprep.subr.mxu0 0.0
    %790 = vmatpush1.msra.mxu0 0.0
    %791 = vmatprep.subr.mxu0 0.0
    %792 = vmatpush1.msra.mxu0 0.0
    %793 = vmatprep.subr.mxu0 0.0
    %794 = vmatpush1.msra.mxu0 0.0
    %795 = vmatprep.subr.mxu0 0.0
    %796 = vmatpush1.msra.mxu0 0.0
    %797 = vmatprep.mubr.f32.mxu0 0.0
    %798 = vmatmul.mubr.f32.gmra.mrb[0].mxu0 %v715
    %v799 = vpop.f32.mrb[0].mxu0
    %v800 = vadd.f32 %v732, %v799
    %v801 = vpop.f32.mrb[0].mxu0
    %802 = vdwg.mxu0
    %v803 = vmax.f32 %v800, 0.0
    %v804 = vld [vmem:[#allocation8 + $0x780] sm:$0xff]
    %v805 = vld [vmem:[#allocation8 + $0x788] sm:$0xff]
    %v806 = vld [vmem:[#allocation8 + $0x790] sm:$0xff]
    %v807 = vld [vmem:[#allocation8 + $0x798] sm:$0xff]
    %v808 = vld [vmem:[#allocation8 + $0x7a0] sm:$0xff]
    %v809 = vld [vmem:[#allocation8 + $0x7a8] sm:$0xff]
    %v810 = vld [vmem:[#allocation8 + $0x7b0] sm:$0xff]
    %v811 = vld [vmem:[#allocation8 + $0x7b8] sm:$0xff]
    %v812 = vld [vmem:[#allocation8 + $0x7c0] sm:$0xff]
    %v813 = vld [vmem:[#allocation8 + $0x7c8] sm:$0xff]
    %v814 = vld [vmem:[#allocation8 + $0x7d0] sm:$0xff]
    %v815 = vld [vmem:[#allocation8 + $0x7d8] sm:$0xff]
    %v816 = vld [vmem:[#allocation8 + $0x7e0] sm:$0xff]
    %v817 = vld [vmem:[#allocation8 + $0x7e8] sm:$0xff]
    %v818 = vld [vmem:[#allocation8 + $0x7f0] sm:$0xff]
    %v819 = vld [vmem:[#allocation8 + $0x7f8] sm:$0xff]
    %v820 = vld [vmem:[#allocation8 + $0x800] sm:$0xff]
    %v821 = vld [vmem:[#allocation8 + $0x808] sm:$0xff]
    %v822 = vld [vmem:[#allocation8 + $0x810] sm:$0xff]
    %v823 = vld [vmem:[#allocation8 + $0x818] sm:$0xff]
    %v824 = vld [vmem:[#allocation8 + $0x820] sm:$0xff]
    %v825 = vld [vmem:[#allocation8 + $0x828] sm:$0xff]
    %v826 = vld [vmem:[#allocation8 + $0x830] sm:$0xff]
    %v827 = vld [vmem:[#allocation8 + $0x838] sm:$0xff]
    %v828 = vld [vmem:[#allocation8 + $0x840] sm:$0xff]
    %v829 = vld [vmem:[#allocation8 + $0x848] sm:$0xff]
    %v830 = vld [vmem:[#allocation8 + $0x850] sm:$0xff]
    %v831 = vld [vmem:[#allocation8 + $0x858] sm:$0xff]
    %v832 = vld [vmem:[#allocation8 + $0x860] sm:$0xff]
    %v833 = vld [vmem:[#allocation8 + $0x868] sm:$0xff]
    %v834 = vld [vmem:[#allocation8 + $0x870] sm:$0xff]
    %v835 = vld [vmem:[#allocation8 + $0x878] sm:$0xff]
    %v836 = vld [vmem:[#allocation8 + $0x880] sm:$0xff]
    %v837 = vld [vmem:[#allocation8 + $0x888] sm:$0xff]
    %v838 = vld [vmem:[#allocation8 + $0x890] sm:$0xff]
    %v839 = vld [vmem:[#allocation8 + $0x898] sm:$0xff]
    %v840 = vld [vmem:[#allocation8 + $0x8a0] sm:$0xff]
    %v841 = vld [vmem:[#allocation8 + $0x8a8] sm:$0xff]
    %v842 = vld [vmem:[#allocation8 + $0x8b0] sm:$0xff]
    %v843 = vld [vmem:[#allocation8 + $0x8b8] sm:$0xff]
    %v844 = vld [vmem:[#allocation8 + $0x8c0] sm:$0xff]
    %v845 = vld [vmem:[#allocation8 + $0x8c8] sm:$0xff]
    %v846 = vld [vmem:[#allocation8 + $0x8d0] sm:$0xff]
    %v847 = vld [vmem:[#allocation8 + $0x8d8] sm:$0xff]
    %v848 = vld [vmem:[#allocation8 + $0x8e0] sm:$0xff]
    %v849 = vld [vmem:[#allocation8 + $0x8e8] sm:$0xff]
    %v850 = vld [vmem:[#allocation8 + $0x8f0] sm:$0xff]
    %v851 = vld [vmem:[#allocation8 + $0x8f8] sm:$0xff]
    %s852 = scalar_lea.vmem [#allocation9], 5
    %v853 = vld [vmem:[%s852] ss:$8 sm:$0x7]
    %v855 = vlaneseq
    %v856 = vshrl.u32 %v855, 7
    %v857 = vsub.s32 0, %v856
    %v858 = vrot.slane %v853, %v857
    %v859 = vlaneseq
    %v860 = vshrl.u32 %v859, 7
    %v861 = vsub.s32 1, %v860
    %v862 = vrot.slane %v853, %v861
    %v863 = vlaneseq
    %v864 = vshrl.u32 %v863, 7
    %v865 = vsub.s32 2, %v864
    %v866 = vrot.slane %v853, %v865
    %870 = vmatprep.subr.mxu0 %v805
    %871 = vmatpush1.msra.mxu0 %v804
    %872 = vmatprep.subr.mxu0 %v808
    %873 = vmatpush1.msra.mxu0 %v807
    %874 = vmatprep.subr.mxu0 %v811
    %875 = vmatpush1.msra.mxu0 %v810
    %876 = vmatprep.subr.mxu0 %v814
    %877 = vmatpush1.msra.mxu0 %v813
    %878 = vmatprep.subr.mxu0 %v817
    %879 = vmatpush1.msra.mxu0 %v816
    %880 = vmatprep.subr.mxu0 %v820
    %881 = vmatpush1.msra.mxu0 %v819
    %882 = vmatprep.subr.mxu0 %v823
    %883 = vmatpush1.msra.mxu0 %v822
    %884 = vmatprep.subr.mxu0 %v826
    %885 = vmatpush1.msra.mxu0 %v825
    %886 = vmatprep.subr.mxu0 %v829
    %887 = vmatpush1.msra.mxu0 %v828
    %888 = vmatprep.subr.mxu0 %v832
    %889 = vmatpush1.msra.mxu0 %v831
    %890 = vmatprep.subr.mxu0 %v835
    %891 = vmatpush1.msra.mxu0 %v834
    %892 = vmatprep.subr.mxu0 %v838
    %893 = vmatpush1.msra.mxu0 %v837
    %894 = vmatprep.subr.mxu0 %v841
    %895 = vmatpush1.msra.mxu0 %v840
    %896 = vmatprep.subr.mxu0 %v844
    %897 = vmatpush1.msra.mxu0 %v843
    %898 = vmatprep.subr.mxu0 %v847
    %899 = vmatpush1.msra.mxu0 %v846
    %900 = vmatprep.subr.mxu0 %v850
    %901 = vmatpush1.msra.mxu0 %v849
    %902 = vmatprep.subr.mxu0 0.0
    %903 = vmatpush1.msra.mxu0 0.0
    %904 = vmatprep.subr.mxu0 0.0
    %905 = vmatpush1.msra.mxu0 0.0
    %906 = vmatprep.subr.mxu0 0.0
    %907 = vmatpush1.msra.mxu0 0.0
    %908 = vmatprep.subr.mxu0 0.0
    %909 = vmatpush1.msra.mxu0 0.0
    %910 = vmatprep.subr.mxu0 0.0
    %911 = vmatpush1.msra.mxu0 0.0
    %912 = vmatprep.subr.mxu0 0.0
    %913 = vmatpush1.msra.mxu0 0.0
    %914 = vmatprep.subr.mxu0 0.0
    %915 = vmatpush1.msra.mxu0 0.0
    %916 = vmatprep.subr.mxu0 0.0
    %917 = vmatpush1.msra.mxu0 0.0
    %918 = vmatprep.subr.mxu0 0.0
    %919 = vmatpush1.msra.mxu0 0.0
    %920 = vmatprep.subr.mxu0 0.0
    %921 = vmatpush1.msra.mxu0 0.0
    %922 = vmatprep.subr.mxu0 0.0
    %923 = vmatpush1.msra.mxu0 0.0
    %924 = vmatprep.subr.mxu0 0.0
    %925 = vmatpush1.msra.mxu0 0.0
    %926 = vmatprep.subr.mxu0 0.0
    %927 = vmatpush1.msra.mxu0 0.0
    %928 = vmatprep.subr.mxu0 0.0
    %929 = vmatpush1.msra.mxu0 0.0
    %930 = vmatprep.subr.mxu0 0.0
    %931 = vmatpush1.msra.mxu0 0.0
    %932 = vmatprep.subr.mxu0 0.0
    %933 = vmatpush1.msra.mxu0 0.0
    %934 = vmatprep.mubr.f32.mxu0 0.0
    %935 = vmatmul.mubr.f32.gmra.mrb[0].mxu0 %v803
    %v936 = vpop.f32.mrb[0].mxu0
    %v937 = vadd.f32 %v858, %v936
    %v938 = vpop.f32.mrb[0].mxu0
    %v939 = vadd.f32 %v862, %v938
    %940 = vdwg.mxu0
    %941 = vmatprep.subr.mxu0 0.0
    %942 = vmatpush1.msra.mxu0 %v806
    %943 = vmatprep.subr.mxu0 0.0
    %944 = vmatpush1.msra.mxu0 %v809
    %945 = vmatprep.subr.mxu0 0.0
    %946 = vmatpush1.msra.mxu0 %v812
    %947 = vmatprep.subr.mxu0 0.0
    %948 = vmatpush1.msra.mxu0 %v815
    %949 = vmatprep.subr.mxu0 0.0
    %950 = vmatpush1.msra.mxu0 %v818
    %951 = vmatprep.subr.mxu0 0.0
    %952 = vmatpush1.msra.mxu0 %v821
    %953 = vmatprep.subr.mxu0 0.0
    %954 = vmatpush1.msra.mxu0 %v824
    %955 = vmatprep.subr.mxu0 0.0
    %956 = vmatpush1.msra.mxu0 %v827
    %957 = vmatprep.subr.mxu0 0.0
    %958 = vmatpush1.msra.mxu0 %v830
    %959 = vmatprep.subr.mxu0 0.0
    %960 = vmatpush1.msra.mxu0 %v833
    %961 = vmatprep.subr.mxu0 0.0
    %962 = vmatpush1.msra.mxu0 %v836
    %963 = vmatprep.subr.mxu0 0.0
    %964 = vmatpush1.msra.mxu0 %v839
    %965 = vmatprep.subr.mxu0 0.0
    %966 = vmatpush1.msra.mxu0 %v842
    %967 = vmatprep.subr.mxu0 0.0
    %968 = vmatpush1.msra.mxu0 %v845
    %969 = vmatprep.subr.mxu0 0.0
    %970 = vmatpush1.msra.mxu0 %v848
    %971 = vmatprep.subr.mxu0 0.0
    %972 = vmatpush1.msra.mxu0 %v851
    %973 = vmatprep.subr.mxu0 0.0
    %974 = vmatpush1.msra.mxu0 0.0
    %975 = vmatprep.subr.mxu0 0.0
    %976 = vmatpush1.msra.mxu0 0.0
    %977 = vmatprep.subr.mxu0 0.0
    %978 = vmatpush1.msra.mxu0 0.0
    %979 = vmatprep.subr.mxu0 0.0
    %980 = vmatpush1.msra.mxu0 0.0
    %981 = vmatprep.subr.mxu0 0.0
    %982 = vmatpush1.msra.mxu0 0.0
    %983 = vmatprep.subr.mxu0 0.0
    %984 = vmatpush1.msra.mxu0 0.0
    %985 = vmatprep.subr.mxu0 0.0
    %986 = vmatpush1.msra.mxu0 0.0
    %987 = vmatprep.subr.mxu0 0.0
    %988 = vmatpush1.msra.mxu0 0.0
    %989 = vmatprep.subr.mxu0 0.0
    %990 = vmatpush1.msra.mxu0 0.0
    %991 = vmatprep.subr.mxu0 0.0
    %992 = vmatpush1.msra.mxu0 0.0
    %993 = vmatprep.subr.mxu0 0.0
    %994 = vmatpush1.msra.mxu0 0.0
    %995 = vmatprep.subr.mxu0 0.0
    %996 = vmatpush1.msra.mxu0 0.0
    %997 = vmatprep.subr.mxu0 0.0
    %998 = vmatpush1.msra.mxu0 0.0
    %999 = vmatprep.subr.mxu0 0.0
    %1000 = vmatpush1.msra.mxu0 0.0
    %1001 = vmatprep.subr.mxu0 0.0
    %1002 = vmatpush1.msra.mxu0 0.0
    %1003 = vmatprep.subr.mxu0 0.0
    %1004 = vmatpush1.msra.mxu0 0.0
    %1005 = vmatprep.mubr.f32.mxu0 0.0
    %1006 = vmatmul.mubr.f32.gmra.mrb[0].mxu0 %v803
    %v1007 = vpop.f32.mrb[0].mxu0
    %v1008 = vadd.f32 %v866, %v1007
    %v1009 = vpop.f32.mrb[0].mxu0
    %1010 = vdwg.mxu0
    %v1011 = vadd.f32 %v711, %v937
    %1012 = vst [vmem:[#allocation11] sm:$0xff] %v1011
    %1013 = vst [vmem:[#allocation11 + $0x8] sm:$0xff] %v597
    %1014 = vst [vmem:[#allocation11 + $0x10] sm:$0xff] %v937
    %1015 = vst [vmem:[#allocation11 + $0x18] sm:$0xff] %v939
    %1016 = vst [vmem:[#allocation11 + $0x20] sm:$0xff] %v1008
    // Predicated region
    $region38: #{tpu_custom_call.1} parent=1 // pred_check
      _
    $region39: #{tpu_custom_call.1} parent=1 // pred_check_branch
      %1018 = sbr.rel (0) target = $region41
    $region40: #{tpu_custom_call.1} parent=1 // pred_region
      %s1020 = ssub.s32 640, 640
      %1021 = vsyncadd [#allocation5], %s1020
      %s1023 = sshll.u32 [#allocation11], 4
      %s1024 = int_to_ptr.vmem [resolvable:$true] %s1023
      %1026 = dma.vmem_to_hbm [thread:$0]  %s1024, 640, %s4, [#allocation5]
    $region41: #{tpu_custom_call.1} parent=1 // pred_fallthru
      _
    // Predicated region
    $region42: #{tpu_custom_call.1} parent=1 // pred_check
      _
    $region43: #{tpu_custom_call.1} parent=1 // pred_check_branch
      %1028 = sbr.rel (0) target = $region45
    $region44: #{tpu_custom_call.1} parent=1 // pred_region
      %1029 = dma.done [#allocation5], 640
    $region45: #{tpu_custom_call.1} parent=1 // pred_fallthru
      _
    %1030 = vsyncpa [#allocation4], 1
    %1031 = vsyncpa [#allocation7], 1
    %1032 = vsyncpa [#allocation10], 1
    %1033 = vsyncpa [#allocation5], 1

</llo_original>
